<compile_context>
chip_gen: v7x
topology: tpu7x:2x2x1
jax: 0.10.0
libtpu: 0.0.40
codegen_flags: <defaults>
</compile_context>

<pallas_src>
import numpy as np
import jax
import jax.numpy as jnp
from jax.experimental import pallas as pl
from jax.experimental.pallas import tpu as pltpu

FP8_PAD_MULTIPLE = 16  # Fp8Padding pads each group's rows to a multiple of 16.


def _round_up(x, m):
    return -(-x // m) * m


def _choose_tile_and_pad(dim, want):
    """Pick a lane-aligned tile close to `want` and the padded extent for `dim`.

    Returns (tile, padded_dim): tile is a multiple of 128, padded_dim a multiple of
    tile. The dimension is padded up to the tile (zero padding contributes nothing
    numerically), avoiding the "tile must divide round_up(dim,128)" cliff that could
    silently collapse tiles to 128 (e.g. dim=600)."""
    want = max(128, _round_up(want, 128))
    dim128 = _round_up(dim, 128)
    if dim128 <= want:
        return dim128, dim128              # whole (128-padded) dim in one tile
    nsteps = -(-dim128 // want)
    tile = _round_up(-(-dim128 // nsteps), 128)
    return tile, tile * nsteps


def _grouped_gemm_kernel(gid_ref, x_ref, w_ref, b_ref, o_ref, acc_ref):
    # gid_ref: SMEM [num_m_tiles] int32  (scalar prefetch; consumed by index_maps only)
    # x_ref:   (tm, tk)  bf16  activation tile (a row tile belongs to exactly one group)
    # w_ref:   (tk, tn)  bf16  pre-transposed weight tile of that group (group dim squeezed)
    # b_ref:   (1, tn)   f32   bias tile of that group (group dim squeezed)
    # o_ref:   (tm, tn)        output tile
    # acc_ref: (tm, tn)  f32   VMEM accumulator scratch
    del gid_ref
    k = pl.program_id(2)

    @pl.when(k == 0)
    def _():
        # Fold the bias into the accumulator init (saves a (tm,tn) add at finalize).
        acc_ref[...] = jnp.broadcast_to(b_ref[...], acc_ref.shape)

    acc_ref[...] += jnp.dot(x_ref[...], w_ref[...],
                            preferred_element_type=jnp.float32)

    @pl.when(k == pl.num_programs(2) - 1)
    def _():
        o_ref[...] = acc_ref[...].astype(o_ref.dtype)


def _ragged_grouped_gemm(x_flat, w_t, b3, gid, *, tm, tn, tk, out_dtype):
    """x_flat: [M_pad, K_pad] bf16, w_t: [G, K_pad, N_pad] bf16, b3: [G, 1, N_pad] f32,
    gid: [M_pad // tm] int32 per-row-tile group ids -> out: [M_pad, N_pad] out_dtype."""
    M_pad, K_pad = x_flat.shape
    N_pad = w_t.shape[2]
    grid = (M_pad // tm, N_pad // tn, K_pad // tk)

    # Double-buffered x/w/bias/out plus the f32 accumulator; keep headroom but stay
    # under v7x's 64 MiB physical VMEM (v5e/v6e have 128 MiB, so the cap is safe there).
    out_bytes = jnp.dtype(out_dtype).itemsize
    est = (2 * tm * tk * 2 + 2 * tk * tn * 2 + 2 * tn * 4
           + 2 * tm * tn * out_bytes + tm * tn * 4)
    vmem_limit = int(min(max(32 << 20, est * 3 // 2 + (2 << 20)), 56 << 20))

    return pl.pallas_call(
        _grouped_gemm_kernel,
        out_shape=jax.ShapeDtypeStruct((M_pad, N_pad), out_dtype),
        grid_spec=pltpu.PrefetchScalarGridSpec(
            num_scalar_prefetch=1,
            grid=grid,
            in_specs=[
                # activations: flat ragged layout, row tile i, k tile k
                pl.BlockSpec((tm, tk), lambda i, j, k, gid: (i, k)),
                # weights: group picked by prefetched per-row-tile group id; leading
                # group dim squeezed so the kernel sees a clean (tk, tn) tile.
                pl.BlockSpec((None, tk, tn), lambda i, j, k, gid: (gid[i], k, j)),
                # bias: per group / n tile, independent of k (DMA'd once per (i, j))
                pl.BlockSpec((None, 1, tn), lambda i, j, k, gid: (gid[i], 0, j)),
            ],
            out_specs=pl.BlockSpec((tm, tn), lambda i, j, k, gid: (i, j)),
            scratch_shapes=[pltpu.VMEM((tm, tn), jnp.float32)],
        ),
        compiler_params=pltpu.CompilerParams(
            dimension_semantics=("parallel", "parallel", "arbitrary"),
            vmem_limit_bytes=vmem_limit,
        ),
    )(gid, x_flat, w_t, b3)


def prepare_grouped_linear_params(weights, biases, *, tn=1024, tk=1024,
                                  compute_dtype=jnp.bfloat16):
    """One-time weight preprocessing, hoisted out of the per-call path.

    weights: [G, out_features, in_features] (torch Linear layout), biases: [G, out_features].
    Transposes to [G, IN, OUT], casts to the MXU compute dtype and pads K/N to tile
    multiples so the kernel's stores stay lane-dense."""
    G, OUT, IN = weights.shape
    tk_eff, K_pad = _choose_tile_and_pad(IN, tk)
    tn_eff, N_pad = _choose_tile_and_pad(OUT, tn)
    w_t = jnp.transpose(weights, (0, 2, 1)).astype(compute_dtype)      # (G, IN, OUT)
    w_t = jnp.pad(w_t, ((0, 0), (0, K_pad - IN), (0, N_pad - OUT)))    # (G, K_pad, N_pad)
    b3 = jnp.pad(biases.astype(jnp.float32),
                 ((0, 0), (0, N_pad - OUT))).reshape(G, 1, N_pad)
    return dict(w_t=w_t, b3=b3, num_gemms=G, in_features=IN, out_features=OUT,
                K_pad=K_pad, N_pad=N_pad, tk=tk_eff, tn=tn_eff,
                compute_dtype=compute_dtype)


def grouped_linear_with_padding(inp, m_splits, params=None, *, weights=None, biases=None,
                                fp8=True, tm=512, tn=1024, tk=1024,
                                compute_dtype=jnp.bfloat16, out_dtype=None):
    """Forward pass of TorchGroupedLinearWithPadding.

    inp:      [sum(m_splits), in_features]
    m_splits: python list of ints (static), rows per group
    params:   output of prepare_grouped_linear_params (preferred; hoists weight prep),
              or pass raw `weights`/`biases` to prepare inline.
    returns:  [sum(m_splits), out_features]

    Rows are padded per group to a multiple of the row tile (>= 128, which subsumes
    Fp8Padding's multiple-of-16 rule); padded rows are dropped afterwards, so the output
    is identical whether fp8 is True or False — only the discarded intermediate differs.
    Per-generation tiles: v5e tm=tn~512, v7x tm~512-768/tn~1024, v6e tm=tn~1024, tk~2048.
    """
    del fp8  # TODO(synk): real fp8 quantized GEMM numerics are not modeled (bf16/f32 used).
    if params is None:
        params = prepare_grouped_linear_params(weights, biases, tn=tn, tk=tk,
                                               compute_dtype=compute_dtype)
    G = params["num_gemms"]
    IN, OUT = params["in_features"], params["out_features"]
    K_pad = params["K_pad"]
    assert len(m_splits) == G
    out_dtype = inp.dtype if out_dtype is None else out_dtype

    # Row tile: >= 128 (keeps the 256-wide MXU busy), but capped by the largest group so
    # lightly-loaded experts don't pay for huge dead-row padding. Raise tn first (free),
    # then tm, for arithmetic intensity.
    tm_eff = int(_round_up(max(128, min(tm, _round_up(max(m_splits), 128))), 128))
    pad_rows = [_round_up(m, tm_eff) for m in m_splits]
    M_pad = sum(pad_rows)

    # ---- Fp8Padding glue (still XLA-side): per-group zero-pad rows, pad K, flatten ----
    # TODO(synk): fuse this pad/unpad into the kernel with element-offset index_maps and
    # masked tail stores to remove two full HBM round trips of activations/outputs.
    offsets = np.cumsum([0] + list(m_splits))
    x_parts = []
    for g in range(G):
        xg = inp[offsets[g]:offsets[g + 1]]                              # (m_g, IN)
        x_parts.append(jnp.pad(xg, ((0, pad_rows[g] - m_splits[g]), (0, K_pad - IN))))
    x_flat = jnp.concatenate(x_parts, axis=0).astype(params["compute_dtype"])

    # Per-row-tile group id (scalar-prefetched into SMEM, drives weight/bias index_maps).
    gid = jnp.asarray(np.concatenate(
        [np.full(pad_rows[g] // tm_eff, g, dtype=np.int32) for g in range(G)]))

    out_flat = _ragged_grouped_gemm(x_flat, params["w_t"], params["b3"], gid,
                                    tm=tm_eff, tn=params["tn"], tk=params["tk"],
                                    out_dtype=out_dtype)                 # (M_pad, N_pad)

    # ---- Fp8Unpadding glue: drop padded rows (and padded N columns) ----
    pad_off = np.cumsum([0] + pad_rows)
    out = jnp.concatenate(
        [out_flat[pad_off[g]:pad_off[g] + m_splits[g], :OUT] for g in range(G)],
        axis=0)
    return out


if __name__ == "__main__":
    key = jax.random.PRNGKey(0)
    num_gemms = 4
    in_features = 256
    out_features = 512
    m_splits = [72, 120, 40, 152]          # sum = 384 tokens
    total = sum(m_splits)

    k_inp, k_w, k_b = jax.random.split(key, 3)
    inp = jax.random.normal(k_inp, (total, in_features), dtype=jnp.float32)
    # Per-group Linear parameters (torch layout: [out, in]), kaiming-ish scale.
    weights = jax.random.normal(
        k_w, (num_gemms, out_features, in_features), dtype=jnp.float32) / np.sqrt(in_features)
    biases = jax.random.normal(k_b, (num_gemms, out_features), dtype=jnp.float32) * 0.1

    # Weight preprocessing hoisted out of the per-call path (weights are static params).
    params = prepare_grouped_linear_params(weights, biases)

    out = grouped_linear_with_padding(inp, m_splits, params, fp8=True)
    out = jax.block_until_ready(out)

    # Pure-JAX reference: same bf16 operand rounding, f32 accumulation
    # (padding + unpadding cancel out on the kept rows).
    xq = inp.astype(jnp.bfloat16).astype(jnp.float32)
    wq = weights.astype(jnp.bfloat16).astype(jnp.float32)
    ref_chunks = []
    off = 0
    for g, m in enumerate(m_splits):
        ref_chunks.append(xq[off:off + m] @ wq[g].T + biases[g])
        off += m
    ref = jnp.concatenate(ref_chunks, axis=0)

    assert out.shape == (total, out_features)
    np.testing.assert_allclose(np.asarray(out, dtype=np.float32),
                               np.asarray(ref, dtype=np.float32),
                               rtol=2e-2, atol=2e-2)
    print("KERNEL_OK")
</pallas_src>

<mosaic_0001>
module attributes {stable_mosaic.version = 11 : i64} {
  func.func @_grouped_gemm_kernel(%arg0: i32, %arg1: i32, %arg2: i32, %arg3: memref<4xi32, #tpu.memory_space<smem>>, %arg4: memref<256x256xbf16, #tpu.memory_space<vmem>>, %arg5: memref<1x256x512xbf16, #tpu.memory_space<vmem>>, %arg6: memref<1x1x512xf32, #tpu.memory_space<vmem>>, %arg7: memref<256x512xf32, #tpu.memory_space<vmem>>, %arg8: memref<256x512xf32, #tpu.memory_space<vmem>>) attributes {dimension_semantics = [#tpu.dimension_semantics<parallel>, #tpu.dimension_semantics<parallel>, #tpu.dimension_semantics<arbitrary>], iteration_bounds = array<i64: 4, 1, 1>, scalar_prefetch = 1 : i64, scratch_operands = 1 : i64, tpu.core_type = #tpu.core_type<tc>, window_params = [{transform_indices = @transform_0, window_bounds = array<i64: 256, 256>}, {transform_indices = @transform_1, window_bounds = array<i64: 1, 256, 512>}, {transform_indices = @transform_2, window_bounds = array<i64: 1, 1, 512>}, {transform_indices = @transform_3, window_bounds = array<i64: 256, 512>}]} {
    %c0_i32 = arith.constant 0 : i32
    %0 = arith.cmpi eq, %arg2, %c0_i32 : i32
    %1 = arith.extui %0 : i1 to i32
    %c0_i32_0 = arith.constant 0 : i32
    %2 = arith.cmpi ne, %1, %c0_i32_0 : i32
    scf.if %2 {
      %c0_11 = arith.constant 0 : index
      %c0_12 = arith.constant 0 : index
      %c0_13 = arith.constant 0 : index
      %13 = vector.load %arg6[%c0_11, %c0_12, %c0_13] : memref<1x1x512xf32, #tpu.memory_space<vmem>>, vector<1x1x512xf32>
      %14 = vector.shape_cast %13 : vector<1x1x512xf32> to vector<1x512xf32>
      %15 = vector.shape_cast %14 : vector<1x512xf32> to vector<1x512xf32>
      %16 = vector.broadcast %15 : vector<1x512xf32> to vector<256x512xf32>
      %c0_14 = arith.constant 0 : index
      %c0_15 = arith.constant 0 : index
      %17 = vector.load %arg8[%c0_14, %c0_15] : memref<256x512xf32, #tpu.memory_space<vmem>>, vector<256x512xf32>
      tpu.vector_store %arg8[%c0_14, %c0_15], %16 {strides = array<i32>} : memref<256x512xf32, #tpu.memory_space<vmem>>, vector<256x512xf32>,
    } else {
    }
    %c0 = arith.constant 0 : index
    %c0_1 = arith.constant 0 : index
    %3 = vector.load %arg8[%c0, %c0_1] : memref<256x512xf32, #tpu.memory_space<vmem>>, vector<256x512xf32>
    %c0_2 = arith.constant 0 : index
    %c0_3 = arith.constant 0 : index
    %4 = vector.load %arg4[%c0_2, %c0_3] : memref<256x256xbf16, #tpu.memory_space<vmem>>, vector<256x256xbf16>
    %c0_4 = arith.constant 0 : index
    %c0_5 = arith.constant 0 : index
    %c0_6 = arith.constant 0 : index
    %5 = vector.load %arg5[%c0_4, %c0_5, %c0_6] : memref<1x256x512xbf16, #tpu.memory_space<vmem>>, vector<1x256x512xbf16>
    %6 = vector.shape_cast %5 : vector<1x256x512xbf16> to vector<256x512xbf16>
    %cst = arith.constant dense<0.000000e+00> : vector<256x512xf32>
    %7 = tpu.matmul %4, %6, %cst {dimension_numbers = #tpu.dot_dimension_numbers<[1], [0], [0], [1], [0, 0, 1, 1], [], []>} : vector<256x256xbf16>, vector<256x512xbf16>, vector<256x512xf32> -> vector<256x512xf32>
    %8 = arith.addf %3, %7 : vector<256x512xf32>
    %c0_7 = arith.constant 0 : index
    %c0_8 = arith.constant 0 : index
    %9 = vector.load %arg8[%c0_7, %c0_8] : memref<256x512xf32, #tpu.memory_space<vmem>>, vector<256x512xf32>
    tpu.vector_store %arg8[%c0_7, %c0_8], %8 {strides = array<i32>} : memref<256x512xf32, #tpu.memory_space<vmem>>, vector<256x512xf32>,
    %c0_i32_9 = arith.constant 0 : i32
    %10 = arith.cmpi eq, %arg2, %c0_i32_9 : i32
    %11 = arith.extui %10 : i1 to i32
    %c0_i32_10 = arith.constant 0 : i32
    %12 = arith.cmpi ne, %11, %c0_i32_10 : i32
    scf.if %12 {
      %c0_11 = arith.constant 0 : index
      %c0_12 = arith.constant 0 : index
      %13 = vector.load %arg8[%c0_11, %c0_12] : memref<256x512xf32, #tpu.memory_space<vmem>>, vector<256x512xf32>
      %c0_13 = arith.constant 0 : index
      %c0_14 = arith.constant 0 : index
      %14 = vector.load %arg7[%c0_13, %c0_14] : memref<256x512xf32, #tpu.memory_space<vmem>>, vector<256x512xf32>
      tpu.vector_store %arg7[%c0_13, %c0_14], %13 {strides = array<i32>} : memref<256x512xf32, #tpu.memory_space<vmem>>, vector<256x512xf32>,
    } else {
    }
    return
  }
  func.func @transform_0(%arg0: i32, %arg1: i32, %arg2: i32, %arg3: memref<4xi32, #tpu.memory_space<smem>>) -> (i32, i32) {
    %c0_i32 = arith.constant 0 : i32
    return %arg0, %arg2 : i32, i32
  }
  func.func @transform_1(%arg0: i32, %arg1: i32, %arg2: i32, %arg3: memref<4xi32, #tpu.memory_space<smem>>) -> (i32, i32, i32) {
    %0 = arith.index_cast %arg0 : i32 to index
    %1 = memref.load %arg3[%0] : memref<4xi32, #tpu.memory_space<smem>>
    %c0_i32 = arith.constant 0 : i32
    return %1, %arg2, %arg1 : i32, i32, i32
  }
  func.func @transform_2(%arg0: i32, %arg1: i32, %arg2: i32, %arg3: memref<4xi32, #tpu.memory_space<smem>>) -> (i32, i32, i32) {
    %0 = arith.index_cast %arg0 : i32 to index
    %1 = memref.load %arg3[%0] : memref<4xi32, #tpu.memory_space<smem>>
    %c0_i32 = arith.constant 0 : i32
    %c0_i32_0 = arith.constant 0 : i32
    return %1, %c0_i32, %arg1 : i32, i32, i32
  }
  func.func @transform_3(%arg0: i32, %arg1: i32, %arg2: i32, %arg3: memref<4xi32, #tpu.memory_space<smem>>) -> (i32, i32) {
    %c0_i32 = arith.constant 0 : i32
    return %arg0, %arg1 : i32, i32
  }
}

</mosaic_0001>

<llo_original>
// kernel: tpu_custom_call.1
$region0: #{tpu_custom_call.1}
  #allocation0 [shape = 'u32[]', space=smem, size = 0x4, offset = 0x4, fixed_abs, tag = 'smem constant byte address 0x4 - core index']
  #allocation1 [shape = 'u32[144,128]{1,0:T(1,128)}', space=vmem, size = 0x12000, scoped, tag = 'internal scratch']
  #allocation2 [shape = 'f32[256,512]{1,0:T(8,128)}', space=vmem, size = 0x80000, scoped, tag = 'scratch operand']
  #allocation3 [shape = 's32[1]{0}', space=sflag, size = 0x4, scoped, tag = 'scoped memory for tpu_custom_call.1']
  #allocation4 [shape = 'u8[512]{0}', space=smem, size = 0x200, scoped, tag = 'prefetched SMEM operand 0']
  %s0 = inlined_call_operand.hbm [shape: s32[4], index: 0, kind: input, shape index: {}]
  %s1 = inlined_call_operand.hbm [shape: bf16[1024,256], index: 1, kind: input, shape index: {}]
  %s2 = inlined_call_operand.hbm [shape: bf16[4,256,512], index: 2, kind: input, shape index: {}]
  %s3 = inlined_call_operand.hbm [shape: f32[4,1,512], index: 3, kind: input, shape index: {}]
  %s4 = inlined_call_operand.hbm [shape: f32[1024,512], index: 4, kind: output, shape index: {}]
  %s5 = sld [smem:[#allocation0]]
  $region65: #{tpu_custom_call.1} parent=0
    _
  %s7 = ssub.s32 1, %s5
  %s8 = scalar_select 0, %s7, %s5
  %10 = dma.hbm_to_smem %s0, 16, [#allocation4], [#allocation3]
  %11 = dma.done [#allocation3], 16
  %12 = sfence
  $region1: #{tpu_custom_call.1} parent=0
    #allocation5 [shape = 'u8[262144]{0}', space=vmem, size = 0x40000, scoped, tag = 'input window, operand 1']
    #allocation6 [shape = 's32[2]{0}', space=sflag, size = 0x8, scoped, tag = 'scoped memory for tpu_custom_call.1']
    #allocation7 [shape = 's32[2]{0}', space=sflag, size = 0x8, scoped, tag = 'scoped memory for tpu_custom_call.1']
    #allocation8 [shape = 'u8[524288]{0}', space=vmem, size = 0x80000, scoped, tag = 'input window, operand 2']
    #allocation9 [shape = 's32[2]{0}', space=sflag, size = 0x8, scoped, tag = 'scoped memory for tpu_custom_call.1']
    #allocation10 [shape = 'u8[4096]{0}', space=vmem, size = 0x1000, scoped, tag = 'input window, operand 3']
    #allocation11 [shape = 'u8[1048576]{0}', space=vmem, size = 0x100000, scoped, tag = 'output window, operand 0']
    %13 = vsyncpa [#allocation6], 0
    %s14 = scalar_lea.sflag [#allocation6], 1
    %15 = vsyncpa %s14, 0
    %16 = vsyncpa [#allocation9], 0
    %s17 = scalar_lea.sflag [#allocation9], 1
    %18 = vsyncpa %s17, 0
    %19 = vsyncpa [#allocation7], 0
    %s20 = scalar_lea.sflag [#allocation7], 1
    %21 = vsyncpa %s20, 0
    loop: start=0, step=1, limit=6
    $region2: #{tpu_custom_call.1} parent=1 // loop_pre_header
      _
    $region3: #{tpu_custom_call.1} parent=1 // loop_header
      %s23 = sphi 0, %s27
      %p24 = scmp.ge.s32.totalorder %s23, 6
      %s30 = sphi 0, %s49
      %s31 = sphi 0, %s45
      %s32 = sphi 0, %s41
      %s33 = sphi 0, %s30
      %s34 = sphi 0, %s31
      %s35 = sphi 0, %s32
      %s36 = sphi 0, %s33
      %s37 = sphi 0, %s34
      %s38 = sphi 0, %s35
      %s54 = sphi 0, %s56
      %s57 = sphi 0, %s54
      %s58 = sphi 0, %s57
      %s74 = sphi 0, %s58
      %s86 = sphi 0, %s88
      %s89 = sphi 0, %s86
      %s90 = sphi 0, %s89
      %s106 = sphi 0, %s90
      %s116 = sphi 0, %s118
      %s119 = sphi 0, %s116
      %s120 = sphi 0, %s119
      %s136 = sphi 0, %s120
      %s144 = sphi 0, %s146
      %s147 = sphi 0, %s144
      %s148 = sphi 0, %s147
      %s164 = sphi 0, %s148
    $region4: #{tpu_custom_call.1} parent=1 // loop_header_branch
      %26 = sbr.rel (%p24) target = $region8
    $region5: #{tpu_custom_call.1} parent=1 // loop_body
      %s28 = ssub.s32 %s23, 1
      %s29 = ssub.s32 %s23, 2
      %s39 = sadd.s32 1, %s32
      %p40 = scmp.ge.s32.totalorder %s39, 1
      %s41 = scalar_select %p40, 0, %s39
      %s42 = sadd.s32 1, %s31
      %s43 = scalar_select %p40, %s42, %s31
      %p44 = scmp.ge.s32.totalorder %s43, 1
      %s45 = scalar_select %p44, 0, %s43
      %s46 = sadd.s32 1, %s30
      %s47 = scalar_select %p44, %s46, %s30
      %p48 = scmp.ge.s32.totalorder %s47, 4
      %s49 = scalar_select %p48, 0, %s47
      %s50 = ssub.s32 %s30, %s49
      %s51 = ssub.s32 %s32, %s41
      %s52 = sor.u32 %s50, %s51
      %p53 = scmp.eq.s32.totalorder %s52, 0
      %s55 = sadd.s32 %s54, 1
      %s56 = scalar_select %p53, %s54, %s55
      %p59 = pneg %p53
      %p60 = scmp.eq.s32.totalorder %s23, 3
      %p61 = por %p59, %p60
      %p62 = scmp.ne.s32.totalorder %s54, %s57
      %p63 = scmp.eq.s32.totalorder %s23, 0
      %p64 = por %p62, %p63
      %p65 = scmp.ne.s32.totalorder %s54, %s57
      %p66 = scmp.eq.s32.totalorder %s28, 3
      %p67 = por %p65, %p66
      %p68 = scmp.ne.s32.totalorder %s57, %s58
      %p69 = scmp.eq.s32.totalorder %s28, 0
      %p70 = por %p68, %p69
      %p71 = scmp.ne.s32.totalorder %s57, %s58
      %p72 = scmp.eq.s32.totalorder %s29, 3
      %p73 = por %p71, %p72
      %p75 = scmp.ne.s32.totalorder %s58, %s74
      %p76 = scmp.eq.s32.totalorder %s29, 0
      %p77 = por %p75, %p76
      %s78 = sld [smem:[#allocation4 + %s30]]
      %s79 = sld [smem:[#allocation4 + %s49]]
      %s80 = ssub.s32 %s78, %s79
      %s81 = ssub.s32 %s32, %s41
      %s82 = sor.u32 %s80, %s81
      %s83 = ssub.s32 %s31, %s45
      %s84 = sor.u32 %s82, %s83
      %p85 = scmp.eq.s32.totalorder %s84, 0
      %s87 = sadd.s32 %s86, 1
      %s88 = scalar_select %p85, %s86, %s87
      %p91 = pneg %p85
      %p92 = scmp.eq.s32.totalorder %s23, 3
      %p93 = por %p91, %p92
      %p94 = scmp.ne.s32.totalorder %s86, %s89
      %p95 = scmp.eq.s32.totalorder %s23, 0
      %p96 = por %p94, %p95
      %p97 = scmp.ne.s32.totalorder %s86, %s89
      %p98 = scmp.eq.s32.totalorder %s28, 3
      %p99 = por %p97, %p98
      %p100 = scmp.ne.s32.totalorder %s89, %s90
      %p101 = scmp.eq.s32.totalorder %s28, 0
      %p102 = por %p100, %p101
      %p103 = scmp.ne.s32.totalorder %s89, %s90
      %p104 = scmp.eq.s32.totalorder %s29, 3
      %p105 = por %p103, %p104
      %p107 = scmp.ne.s32.totalorder %s90, %s106
      %p108 = scmp.eq.s32.totalorder %s29, 0
      %p109 = por %p107, %p108
      %s110 = sld [smem:[#allocation4 + %s30]]
      %s111 = sld [smem:[#allocation4 + %s49]]
      %s112 = ssub.s32 %s110, %s111
      %s113 = ssub.s32 %s31, %s45
      %s114 = sor.u32 %s112, %s113
      %p115 = scmp.eq.s32.totalorder %s114, 0
      %s117 = sadd.s32 %s116, 1
      %s118 = scalar_select %p115, %s116, %s117
      %p121 = pneg %p115
      %p122 = scmp.eq.s32.totalorder %s23, 3
      %p123 = por %p121, %p122
      %p124 = scmp.ne.s32.totalorder %s116, %s119
      %p125 = scmp.eq.s32.totalorder %s23, 0
      %p126 = por %p124, %p125
      %p127 = scmp.ne.s32.totalorder %s116, %s119
      %p128 = scmp.eq.s32.totalorder %s28, 3
      %p129 = por %p127, %p128
      %p130 = scmp.ne.s32.totalorder %s119, %s120
      %p131 = scmp.eq.s32.totalorder %s28, 0
      %p132 = por %p130, %p131
      %p133 = scmp.ne.s32.totalorder %s119, %s120
      %p134 = scmp.eq.s32.totalorder %s29, 3
      %p135 = por %p133, %p134
      %p137 = scmp.ne.s32.totalorder %s120, %s136
      %p138 = scmp.eq.s32.totalorder %s29, 0
      %p139 = por %p137, %p138
      %s140 = ssub.s32 %s30, %s49
      %s141 = ssub.s32 %s31, %s45
      %s142 = sor.u32 %s140, %s141
      %p143 = scmp.eq.s32.totalorder %s142, 0
      %s145 = sadd.s32 %s144, 1
      %s146 = scalar_select %p143, %s144, %s145
      %p149 = pneg %p143
      %p150 = scmp.eq.s32.totalorder %s23, 3
      %p151 = por %p149, %p150
      %p152 = scmp.ne.s32.totalorder %s144, %s147
      %p153 = scmp.eq.s32.totalorder %s23, 0
      %p154 = por %p152, %p153
      %p155 = scmp.ne.s32.totalorder %s144, %s147
      %p156 = scmp.eq.s32.totalorder %s28, 3
      %p157 = por %p155, %p156
      %p158 = scmp.ne.s32.totalorder %s147, %s148
      %p159 = scmp.eq.s32.totalorder %s28, 0
      %p160 = por %p158, %p159
      %p161 = scmp.ne.s32.totalorder %s147, %s148
      %p162 = scmp.eq.s32.totalorder %s29, 3
      %p163 = por %p161, %p162
      %p165 = scmp.ne.s32.totalorder %s148, %s164
      %p166 = scmp.eq.s32.totalorder %s29, 0
      %p167 = por %p165, %p166
      %p168 = scmp.le.s32.totalorder 1, %s23
      %p169 = scmp.lt.s32.totalorder %s23, 5
      %p170 = pnand %p168, %p169
      %p171 = pneg %p170
      // Predicated region
      $region9: #{tpu_custom_call.1} parent=5 // pred_check
        _
      $region10: #{tpu_custom_call.1} parent=5 // pred_check_branch
        %173 = sbr.rel (%p170) target = $region12
      $region11: #{tpu_custom_call.1} parent=5 // pred_region
        %s174 = ssub.s32 %s23, 1
      $region12: #{tpu_custom_call.1} parent=5 // pred_fallthru
        _
      %p175 = scmp.lt.s32.totalorder %s23, 4
      // Predicated region
      $region13: #{tpu_custom_call.1} parent=5 // pred_check
        %p176 = pneg %p175
      $region14: #{tpu_custom_call.1} parent=5 // pred_check_branch
        %178 = sbr.rel (%p176) target = $region16
      $region15: #{tpu_custom_call.1} parent=5 // pred_region
        // Predicated region
        $region17: #{tpu_custom_call.1} parent=15 // pred_check
          %p179 = pneg %p64
        $region18: #{tpu_custom_call.1} parent=15 // pred_check_branch
          %181 = sbr.rel (%p179) target = $region20
        $region19: #{tpu_custom_call.1} parent=15 // pred_region
          %s182 = sand.u32 %s54, 1
          %s183 = scalar_lea.sflag [#allocation6], %s182
          %s184 = sand.u32 %s54, 1
          %s185 = smul.addr %s184, 256
          %s186 = scalar_lea.vmem [#allocation5], %s185
          %s187 = smul.u32 32, %s30
          %s188 = smul.u32 2, %s32
          %s190 = ssub.s32 4096, 4096
          %191 = vsyncadd %s183, %s190
          %s192 = smul.addr %s187, 2
          %s193 = sadd.s32 %s188, %s192
          %s194 = smul.addr %s193, 64
          %s195 = scalar_lea.hbm %s1, %s194
          %s196 = sshll.u32 %s186, 4
          %s197 = int_to_ptr.vmem [resolvable:$true] %s196
          %202 = dma.hbm_to_vmem [thread:$0]  %s195, 4096, %s197, %s183, 128, 128, 8
        $region20: #{tpu_custom_call.1} parent=15 // pred_fallthru
          _
        // Predicated region
        $region21: #{tpu_custom_call.1} parent=15 // pred_check
          %p203 = pneg %p96
        $region22: #{tpu_custom_call.1} parent=15 // pred_check_branch
          %205 = sbr.rel (%p203) target = $region24
        $region23: #{tpu_custom_call.1} parent=15 // pred_region
          %s206 = sand.u32 %s23, 1
          %s207 = scalar_lea.sflag [#allocation9], %s206
          %s208 = sand.u32 %s86, 1
          %s209 = smul.addr %s208, 512
          %s210 = scalar_lea.vmem [#allocation8], %s209
          %s211 = sld [smem:[#allocation4 + %s30]]
          %s212 = smul.u32 32, %s32
          %s213 = smul.u32 4, %s31
          %s215 = ssub.s32 8192, 8192
          %216 = vsyncadd %s207, %s215
          %s217 = smul.addr %s212, 4
          %s218 = sadd.s32 %s213, %s217
          %s219 = smul.addr %s211, 128
          %s220 = sadd.s32 %s218, %s219
          %s221 = smul.addr %s220, 64
          %s222 = scalar_lea.hbm %s2, %s221
          %s223 = sshll.u32 %s210, 4
          %s224 = int_to_ptr.vmem [resolvable:$true] %s223
          %229 = dma.hbm_to_vmem [thread:$0]  %s222, 8192, %s224, %s207, 256, 256, 16
        $region24: #{tpu_custom_call.1} parent=15 // pred_fallthru
          _
        // Predicated region
        $region25: #{tpu_custom_call.1} parent=15 // pred_check
          %p230 = pneg %p126
        $region26: #{tpu_custom_call.1} parent=15 // pred_check_branch
          %232 = sbr.rel (%p230) target = $region28
        $region27: #{tpu_custom_call.1} parent=15 // pred_region
          %s233 = sand.u32 %s23, 1
          %s234 = scalar_lea.sflag [#allocation9], %s233
          %s235 = sand.u32 %s116, 1
          %s236 = smul.addr %s235, 4
          %s237 = scalar_lea.vmem [#allocation10], %s236
          %s238 = sld [smem:[#allocation4 + %s30]]
          %s239 = smul.u32 4, %s31
          %s241 = ssub.s32 64, 64
          %242 = vsyncadd %s234, %s241
          %s243 = smul.addr %s238, 4
          %s244 = sadd.s32 %s239, %s243
          %s245 = smul.addr %s244, 16
          %s246 = scalar_lea.hbm %s3, %s245
          %s248 = sshll.u32 %s237, 4
          %s249 = int_to_ptr.vmem [resolvable:$true] %s248
          %251 = dma.hbm_to_vmem [thread:$0]  %s246, 64, %s249, %s234
        $region28: #{tpu_custom_call.1} parent=15 // pred_fallthru
          _
      $region16: #{tpu_custom_call.1} parent=5 // pred_fallthru
        _
      %p252 = scmp.le.s32.totalorder 1, %s23
      %p253 = scmp.lt.s32.totalorder %s23, 5
      %p254 = pnand %p252, %p253
      %p255 = pneg %p254
      // Predicated region
      $region29: #{tpu_custom_call.1} parent=5 // pred_check
        _
      $region30: #{tpu_custom_call.1} parent=5 // pred_check_branch
        %257 = sbr.rel (%p254) target = $region32
      $region31: #{tpu_custom_call.1} parent=5 // pred_region
        %s258 = ssub.s32 %s23, 1
        %s259 = sand.u32 %s57, 1
        %s260 = scalar_lea.sflag [#allocation6], %s259
        %s261 = sand.u32 %s57, 1
        %s262 = smul.addr %s261, 256
        %s263 = scalar_lea.vmem [#allocation5], %s262
        // Predicated region
        $region33: #{tpu_custom_call.1} parent=31 // pred_check
          %p264 = pneg %p70
        $region34: #{tpu_custom_call.1} parent=31 // pred_check_branch
          %266 = sbr.rel (%p264) target = $region36
        $region35: #{tpu_custom_call.1} parent=31 // pred_region
          %267 = dma.done %s260, 4096
        $region36: #{tpu_custom_call.1} parent=31 // pred_fallthru
          _
        %s268 = sand.u32 %s28, 1
        %s269 = scalar_lea.sflag [#allocation9], %s268
        %s270 = sand.u32 %s89, 1
        %s271 = smul.addr %s270, 512
        %s272 = scalar_lea.vmem [#allocation8], %s271
        // Predicated region
        $region37: #{tpu_custom_call.1} parent=31 // pred_check
          %p273 = pneg %p102
        $region38: #{tpu_custom_call.1} parent=31 // pred_check_branch
          %275 = sbr.rel (%p273) target = $region40
        $region39: #{tpu_custom_call.1} parent=31 // pred_region
          %276 = dma.done %s269, 8192
        $region40: #{tpu_custom_call.1} parent=31 // pred_fallthru
          _
        %s277 = sand.u32 %s28, 1
        %s278 = scalar_lea.sflag [#allocation9], %s277
        %s279 = sand.u32 %s119, 1
        %s280 = smul.addr %s279, 4
        %s281 = scalar_lea.vmem [#allocation10], %s280
        // Predicated region
        $region41: #{tpu_custom_call.1} parent=31 // pred_check
          %p282 = pneg %p132
        $region42: #{tpu_custom_call.1} parent=31 // pred_check_branch
          %284 = sbr.rel (%p282) target = $region44
        $region43: #{tpu_custom_call.1} parent=31 // pred_region
          %285 = dma.done %s278, 64
        $region44: #{tpu_custom_call.1} parent=31 // pred_fallthru
          _
        %s286 = sand.u32 %s57, 1
        %s287 = scalar_lea.sflag [#allocation6], %s286
        %s288 = sand.u32 %s57, 1
        %s289 = smul.addr %s288, 256
        %s290 = scalar_lea.vmem [#allocation5], %s289
        %p291 = pneg %p70
        %p292 = pneg %p67
        %s293 = sand.u32 %s28, 1
        %s294 = scalar_lea.sflag [#allocation9], %s293
        %s295 = sand.u32 %s89, 1
        %s296 = smul.addr %s295, 512
        %s297 = scalar_lea.vmem [#allocation8], %s296
        %p298 = pneg %p102
        %p299 = pneg %p99
        %s300 = sand.u32 %s28, 1
        %s301 = scalar_lea.sflag [#allocation9], %s300
        %s302 = sand.u32 %s119, 1
        %s303 = smul.addr %s302, 4
        %s304 = scalar_lea.vmem [#allocation10], %s303
        %p305 = pneg %p132
        %p306 = pneg %p129
        %p307 = pneg %p160
        %p308 = pneg %p157
        %s309 = sand.u32 %s147, 1
        %s310 = scalar_lea.sflag [#allocation7], %s309
        %s311 = sand.u32 %s147, 1
        %s312 = smul.addr %s311, 1024
        %s313 = scalar_lea.vmem [#allocation11], %s312
        %s314 = smul.u32 32, %s33
        %s315 = smul.u32 2, %s35
        %s316 = sld [smem:[#allocation4 + %s33]]
        %s317 = smul.u32 32, %s35
        %s318 = smul.u32 4, %s34
        %s319 = sld [smem:[#allocation4 + %s33]]
        %s320 = smul.u32 4, %s34
        %s321 = smul.u32 32, %s33
        %s322 = smul.u32 4, %s34
        %p323 = scmp.eq.s32.totalorder %s35, 0
        // Predicated region
        $region45: #{tpu_custom_call.1} parent=31 // pred_check
          %p324 = pneg %p323
        $region46: #{tpu_custom_call.1} parent=31 // pred_check_branch
          %326 = sbr.rel (%p324) target = $region48
        $region47: #{tpu_custom_call.1} parent=31 // pred_region
          %v327 = vld [vmem:[%s281] sm:$0xf]
          %v329 = vlaneseq
          %v330 = vshrl.u32 %v329, 7
          %v331 = vsub.s32 0, %v330
          %v332 = vrot.slane %v327, %v331
          %v333 = vlaneseq
          %v334 = vshrl.u32 %v333, 7
          %v335 = vsub.s32 1, %v334
          %v336 = vrot.slane %v327, %v335
          %v337 = vlaneseq
          %v338 = vshrl.u32 %v337, 7
          %v339 = vsub.s32 2, %v338
          %v340 = vrot.slane %v327, %v339
          %v341 = vlaneseq
          %v342 = vshrl.u32 %v341, 7
          %v343 = vsub.s32 3, %v342
          %v344 = vrot.slane %v327, %v343
          %349 = vst [vmem:[#allocation2] sm:$0xff] %v332
          %350 = vst [vmem:[#allocation2 + $0x8] sm:$0xff] %v336
          %351 = vst [vmem:[#allocation2 + $0x10] sm:$0xff] %v340
          %352 = vst [vmem:[#allocation2 + $0x18] sm:$0xff] %v344
          %353 = vst [vmem:[#allocation2 + $0x20] sm:$0xff] %v332
          %354 = vst [vmem:[#allocation2 + $0x28] sm:$0xff] %v336
          %355 = vst [vmem:[#allocation2 + $0x30] sm:$0xff] %v340
          %356 = vst [vmem:[#allocation2 + $0x38] sm:$0xff] %v344
          %357 = vst [vmem:[#allocation2 + $0x40] sm:$0xff] %v332
          %358 = vst [vmem:[#allocation2 + $0x48] sm:$0xff] %v336
          %359 = vst [vmem:[#allocation2 + $0x50] sm:$0xff] %v340
          %360 = vst [vmem:[#allocation2 + $0x58] sm:$0xff] %v344
          %361 = vst [vmem:[#allocation2 + $0x60] sm:$0xff] %v332
          %362 = vst [vmem:[#allocation2 + $0x68] sm:$0xff] %v336
          %363 = vst [vmem:[#allocation2 + $0x70] sm:$0xff] %v340
          %364 = vst [vmem:[#allocation2 + $0x78] sm:$0xff] %v344
          %365 = vst [vmem:[#allocation2 + $0x80] sm:$0xff] %v332
          %366 = vst [vmem:[#allocation2 + $0x88] sm:$0xff] %v336
          %367 = vst [vmem:[#allocation2 + $0x90] sm:$0xff] %v340
          %368 = vst [vmem:[#allocation2 + $0x98] sm:$0xff] %v344
          %369 = vst [vmem:[#allocation2 + $0xa0] sm:$0xff] %v332
          %370 = vst [vmem:[#allocation2 + $0xa8] sm:$0xff] %v336
          %371 = vst [vmem:[#allocation2 + $0xb0] sm:$0xff] %v340
          %372 = vst [vmem:[#allocation2 + $0xb8] sm:$0xff] %v344
          %373 = vst [vmem:[#allocation2 + $0xc0] sm:$0xff] %v332
          %374 = vst [vmem:[#allocation2 + $0xc8] sm:$0xff] %v336
          %375 = vst [vmem:[#allocation2 + $0xd0] sm:$0xff] %v340
          %376 = vst [vmem:[#allocation2 + $0xd8] sm:$0xff] %v344
          %377 = vst [vmem:[#allocation2 + $0xe0] sm:$0xff] %v332
          %378 = vst [vmem:[#allocation2 + $0xe8] sm:$0xff] %v336
          %379 = vst [vmem:[#allocation2 + $0xf0] sm:$0xff] %v340
          %380 = vst [vmem:[#allocation2 + $0xf8] sm:$0xff] %v344
          %381 = vst [vmem:[#allocation2 + $0x100] sm:$0xff] %v332
          %382 = vst [vmem:[#allocation2 + $0x108] sm:$0xff] %v336
          %383 = vst [vmem:[#allocation2 + $0x110] sm:$0xff] %v340
          %384 = vst [vmem:[#allocation2 + $0x118] sm:$0xff] %v344
          %385 = vst [vmem:[#allocation2 + $0x120] sm:$0xff] %v332
          %386 = vst [vmem:[#allocation2 + $0x128] sm:$0xff] %v336
          %387 = vst [vmem:[#allocation2 + $0x130] sm:$0xff] %v340
          %388 = vst [vmem:[#allocation2 + $0x138] sm:$0xff] %v344
          %389 = vst [vmem:[#allocation2 + $0x140] sm:$0xff] %v332
          %390 = vst [vmem:[#allocation2 + $0x148] sm:$0xff] %v336
          %391 = vst [vmem:[#allocation2 + $0x150] sm:$0xff] %v340
          %392 = vst [vmem:[#allocation2 + $0x158] sm:$0xff] %v344
          %393 = vst [vmem:[#allocation2 + $0x160] sm:$0xff] %v332
          %394 = vst [vmem:[#allocation2 + $0x168] sm:$0xff] %v336
          %395 = vst [vmem:[#allocation2 + $0x170] sm:$0xff] %v340
          %396 = vst [vmem:[#allocation2 + $0x178] sm:$0xff] %v344
          %397 = vst [vmem:[#allocation2 + $0x180] sm:$0xff] %v332
          %398 = vst [vmem:[#allocation2 + $0x188] sm:$0xff] %v336
          %399 = vst [vmem:[#allocation2 + $0x190] sm:$0xff] %v340
          %400 = vst [vmem:[#allocation2 + $0x198] sm:$0xff] %v344
          %401 = vst [vmem:[#allocation2 + $0x1a0] sm:$0xff] %v332
          %402 = vst [vmem:[#allocation2 + $0x1a8] sm:$0xff] %v336
          %403 = vst [vmem:[#allocation2 + $0x1b0] sm:$0xff] %v340
          %404 = vst [vmem:[#allocation2 + $0x1b8] sm:$0xff] %v344
          %405 = vst [vmem:[#allocation2 + $0x1c0] sm:$0xff] %v332
          %406 = vst [vmem:[#allocation2 + $0x1c8] sm:$0xff] %v336
          %407 = vst [vmem:[#allocation2 + $0x1d0] sm:$0xff] %v340
          %408 = vst [vmem:[#allocation2 + $0x1d8] sm:$0xff] %v344
          %409 = vst [vmem:[#allocation2 + $0x1e0] sm:$0xff] %v332
          %410 = vst [vmem:[#allocation2 + $0x1e8] sm:$0xff] %v336
          %411 = vst [vmem:[#allocation2 + $0x1f0] sm:$0xff] %v340
          %412 = vst [vmem:[#allocation2 + $0x1f8] sm:$0xff] %v344
          %413 = vst [vmem:[#allocation2 + $0x200] sm:$0xff] %v332
          %414 = vst [vmem:[#allocation2 + $0x208] sm:$0xff] %v336
          %415 = vst [vmem:[#allocation2 + $0x210] sm:$0xff] %v340
          %416 = vst [vmem:[#allocation2 + $0x218] sm:$0xff] %v344
          %417 = vst [vmem:[#allocation2 + $0x220] sm:$0xff] %v332
          %418 = vst [vmem:[#allocation2 + $0x228] sm:$0xff] %v336
          %419 = vst [vmem:[#allocation2 + $0x230] sm:$0xff] %v340
          %420 = vst [vmem:[#allocation2 + $0x238] sm:$0xff] %v344
          %421 = vst [vmem:[#allocation2 + $0x240] sm:$0xff] %v332
          %422 = vst [vmem:[#allocation2 + $0x248] sm:$0xff] %v336
          %423 = vst [vmem:[#allocation2 + $0x250] sm:$0xff] %v340
          %424 = vst [vmem:[#allocation2 + $0x258] sm:$0xff] %v344
          %425 = vst [vmem:[#allocation2 + $0x260] sm:$0xff] %v332
          %426 = vst [vmem:[#allocation2 + $0x268] sm:$0xff] %v336
          %427 = vst [vmem:[#allocation2 + $0x270] sm:$0xff] %v340
          %428 = vst [vmem:[#allocation2 + $0x278] sm:$0xff] %v344
          %429 = vst [vmem:[#allocation2 + $0x280] sm:$0xff] %v332
          %430 = vst [vmem:[#allocation2 + $0x288] sm:$0xff] %v336
          %431 = vst [vmem:[#allocation2 + $0x290] sm:$0xff] %v340
          %432 = vst [vmem:[#allocation2 + $0x298] sm:$0xff] %v344
          %433 = vst [vmem:[#allocation2 + $0x2a0] sm:$0xff] %v332
          %434 = vst [vmem:[#allocation2 + $0x2a8] sm:$0xff] %v336
          %435 = vst [vmem:[#allocation2 + $0x2b0] sm:$0xff] %v340
          %436 = vst [vmem:[#allocation2 + $0x2b8] sm:$0xff] %v344
          %437 = vst [vmem:[#allocation2 + $0x2c0] sm:$0xff] %v332
          %438 = vst [vmem:[#allocation2 + $0x2c8] sm:$0xff] %v336
          %439 = vst [vmem:[#allocation2 + $0x2d0] sm:$0xff] %v340
          %440 = vst [vmem:[#allocation2 + $0x2d8] sm:$0xff] %v344
          %441 = vst [vmem:[#allocation2 + $0x2e0] sm:$0xff] %v332
          %442 = vst [vmem:[#allocation2 + $0x2e8] sm:$0xff] %v336
          %443 = vst [vmem:[#allocation2 + $0x2f0] sm:$0xff] %v340
          %444 = vst [vmem:[#allocation2 + $0x2f8] sm:$0xff] %v344
          %445 = vst [vmem:[#allocation2 + $0x300] sm:$0xff] %v332
          %446 = vst [vmem:[#allocation2 + $0x308] sm:$0xff] %v336
          %447 = vst [vmem:[#allocation2 + $0x310] sm:$0xff] %v340
          %448 = vst [vmem:[#allocation2 + $0x318] sm:$0xff] %v344
          %449 = vst [vmem:[#allocation2 + $0x320] sm:$0xff] %v332
          %450 = vst [vmem:[#allocation2 + $0x328] sm:$0xff] %v336
          %451 = vst [vmem:[#allocation2 + $0x330] sm:$0xff] %v340
          %452 = vst [vmem:[#allocation2 + $0x338] sm:$0xff] %v344
          %453 = vst [vmem:[#allocation2 + $0x340] sm:$0xff] %v332
          %454 = vst [vmem:[#allocation2 + $0x348] sm:$0xff] %v336
          %455 = vst [vmem:[#allocation2 + $0x350] sm:$0xff] %v340
          %456 = vst [vmem:[#allocation2 + $0x358] sm:$0xff] %v344
          %457 = vst [vmem:[#allocation2 + $0x360] sm:$0xff] %v332
          %458 = vst [vmem:[#allocation2 + $0x368] sm:$0xff] %v336
          %459 = vst [vmem:[#allocation2 + $0x370] sm:$0xff] %v340
          %460 = vst [vmem:[#allocation2 + $0x378] sm:$0xff] %v344
          %461 = vst [vmem:[#allocation2 + $0x380] sm:$0xff] %v332
          %462 = vst [vmem:[#allocation2 + $0x388] sm:$0xff] %v336
          %463 = vst [vmem:[#allocation2 + $0x390] sm:$0xff] %v340
          %464 = vst [vmem:[#allocation2 + $0x398] sm:$0xff] %v344
          %465 = vst [vmem:[#allocation2 + $0x3a0] sm:$0xff] %v332
          %466 = vst [vmem:[#allocation2 + $0x3a8] sm:$0xff] %v336
          %467 = vst [vmem:[#allocation2 + $0x3b0] sm:$0xff] %v340
          %468 = vst [vmem:[#allocation2 + $0x3b8] sm:$0xff] %v344
          %469 = vst [vmem:[#allocation2 + $0x3c0] sm:$0xff] %v332
          %470 = vst [vmem:[#allocation2 + $0x3c8] sm:$0xff] %v336
          %471 = vst [vmem:[#allocation2 + $0x3d0] sm:$0xff] %v340
          %472 = vst [vmem:[#allocation2 + $0x3d8] sm:$0xff] %v344
          %473 = vst [vmem:[#allocation2 + $0x3e0] sm:$0xff] %v332
          %474 = vst [vmem:[#allocation2 + $0x3e8] sm:$0xff] %v336
          %475 = vst [vmem:[#allocation2 + $0x3f0] sm:$0xff] %v340
          %476 = vst [vmem:[#allocation2 + $0x3f8] sm:$0xff] %v344
        $region48: #{tpu_custom_call.1} parent=31 // pred_fallthru
          _
        %v477 = vld [vmem:[#allocation2] sm:$0xff]
        %v478 = vld [vmem:[#allocation2 + $0x8] sm:$0xff]
        %v479 = vld [vmem:[#allocation2 + $0x10] sm:$0xff]
        %v480 = vld [vmem:[#allocation2 + $0x18] sm:$0xff]
        %v481 = vld [vmem:[#allocation2 + $0x20] sm:$0xff]
        %v482 = vld [vmem:[#allocation2 + $0x28] sm:$0xff]
        %v483 = vld [vmem:[#allocation2 + $0x30] sm:$0xff]
        %v484 = vld [vmem:[#allocation2 + $0x38] sm:$0xff]
        %v485 = vld [vmem:[#allocation2 + $0x40] sm:$0xff]
        %v486 = vld [vmem:[#allocation2 + $0x48] sm:$0xff]
        %v487 = vld [vmem:[#allocation2 + $0x50] sm:$0xff]
        %v488 = vld [vmem:[#allocation2 + $0x58] sm:$0xff]
        %v489 = vld [vmem:[#allocation2 + $0x60] sm:$0xff]
        %v490 = vld [vmem:[#allocation2 + $0x68] sm:$0xff]
        %v491 = vld [vmem:[#allocation2 + $0x70] sm:$0xff]
        %v492 = vld [vmem:[#allocation2 + $0x78] sm:$0xff]
        %v493 = vld [vmem:[#allocation2 + $0x80] sm:$0xff]
        %v494 = vld [vmem:[#allocation2 + $0x88] sm:$0xff]
        %v495 = vld [vmem:[#allocation2 + $0x90] sm:$0xff]
        %v496 = vld [vmem:[#allocation2 + $0x98] sm:$0xff]
        %v497 = vld [vmem:[#allocation2 + $0xa0] sm:$0xff]
        %v498 = vld [vmem:[#allocation2 + $0xa8] sm:$0xff]
        %v499 = vld [vmem:[#allocation2 + $0xb0] sm:$0xff]
        %v500 = vld [vmem:[#allocation2 + $0xb8] sm:$0xff]
        %v501 = vld [vmem:[#allocation2 + $0xc0] sm:$0xff]
        %v502 = vld [vmem:[#allocation2 + $0xc8] sm:$0xff]
        %v503 = vld [vmem:[#allocation2 + $0xd0] sm:$0xff]
        %v504 = vld [vmem:[#allocation2 + $0xd8] sm:$0xff]
        %v505 = vld [vmem:[#allocation2 + $0xe0] sm:$0xff]
        %v506 = vld [vmem:[#allocation2 + $0xe8] sm:$0xff]
        %v507 = vld [vmem:[#allocation2 + $0xf0] sm:$0xff]
        %v508 = vld [vmem:[#allocation2 + $0xf8] sm:$0xff]
        %v509 = vld [vmem:[#allocation2 + $0x100] sm:$0xff]
        %v510 = vld [vmem:[#allocation2 + $0x108] sm:$0xff]
        %v511 = vld [vmem:[#allocation2 + $0x110] sm:$0xff]
        %v512 = vld [vmem:[#allocation2 + $0x118] sm:$0xff]
        %v513 = vld [vmem:[#allocation2 + $0x120] sm:$0xff]
        %v514 = vld [vmem:[#allocation2 + $0x128] sm:$0xff]
        %v515 = vld [vmem:[#allocation2 + $0x130] sm:$0xff]
        %v516 = vld [vmem:[#allocation2 + $0x138] sm:$0xff]
        %v517 = vld [vmem:[#allocation2 + $0x140] sm:$0xff]
        %v518 = vld [vmem:[#allocation2 + $0x148] sm:$0xff]
        %v519 = vld [vmem:[#allocation2 + $0x150] sm:$0xff]
        %v520 = vld [vmem:[#allocation2 + $0x158] sm:$0xff]
        %v521 = vld [vmem:[#allocation2 + $0x160] sm:$0xff]
        %v522 = vld [vmem:[#allocation2 + $0x168] sm:$0xff]
        %v523 = vld [vmem:[#allocation2 + $0x170] sm:$0xff]
        %v524 = vld [vmem:[#allocation2 + $0x178] sm:$0xff]
        %v525 = vld [vmem:[#allocation2 + $0x180] sm:$0xff]
        %v526 = vld [vmem:[#allocation2 + $0x188] sm:$0xff]
        %v527 = vld [vmem:[#allocation2 + $0x190] sm:$0xff]
        %v528 = vld [vmem:[#allocation2 + $0x198] sm:$0xff]
        %v529 = vld [vmem:[#allocation2 + $0x1a0] sm:$0xff]
        %v530 = vld [vmem:[#allocation2 + $0x1a8] sm:$0xff]
        %v531 = vld [vmem:[#allocation2 + $0x1b0] sm:$0xff]
        %v532 = vld [vmem:[#allocation2 + $0x1b8] sm:$0xff]
        %v533 = vld [vmem:[#allocation2 + $0x1c0] sm:$0xff]
        %v534 = vld [vmem:[#allocation2 + $0x1c8] sm:$0xff]
        %v535 = vld [vmem:[#allocation2 + $0x1d0] sm:$0xff]
        %v536 = vld [vmem:[#allocation2 + $0x1d8] sm:$0xff]
        %v537 = vld [vmem:[#allocation2 + $0x1e0] sm:$0xff]
        %v538 = vld [vmem:[#allocation2 + $0x1e8] sm:$0xff]
        %v539 = vld [vmem:[#allocation2 + $0x1f0] sm:$0xff]
        %v540 = vld [vmem:[#allocation2 + $0x1f8] sm:$0xff]
        %v541 = vld [vmem:[#allocation2 + $0x200] sm:$0xff]
        %v542 = vld [vmem:[#allocation2 + $0x208] sm:$0xff]
        %v543 = vld [vmem:[#allocation2 + $0x210] sm:$0xff]
        %v544 = vld [vmem:[#allocation2 + $0x218] sm:$0xff]
        %v545 = vld [vmem:[#allocation2 + $0x220] sm:$0xff]
        %v546 = vld [vmem:[#allocation2 + $0x228] sm:$0xff]
        %v547 = vld [vmem:[#allocation2 + $0x230] sm:$0xff]
        %v548 = vld [vmem:[#allocation2 + $0x238] sm:$0xff]
        %v549 = vld [vmem:[#allocation2 + $0x240] sm:$0xff]
        %v550 = vld [vmem:[#allocation2 + $0x248] sm:$0xff]
        %v551 = vld [vmem:[#allocation2 + $0x250] sm:$0xff]
        %v552 = vld [vmem:[#allocation2 + $0x258] sm:$0xff]
        %v553 = vld [vmem:[#allocation2 + $0x260] sm:$0xff]
        %v554 = vld [vmem:[#allocation2 + $0x268] sm:$0xff]
        %v555 = vld [vmem:[#allocation2 + $0x270] sm:$0xff]
        %v556 = vld [vmem:[#allocation2 + $0x278] sm:$0xff]
        %v557 = vld [vmem:[#allocation2 + $0x280] sm:$0xff]
        %v558 = vld [vmem:[#allocation2 + $0x288] sm:$0xff]
        %v559 = vld [vmem:[#allocation2 + $0x290] sm:$0xff]
        %v560 = vld [vmem:[#allocation2 + $0x298] sm:$0xff]
        %v561 = vld [vmem:[#allocation2 + $0x2a0] sm:$0xff]
        %v562 = vld [vmem:[#allocation2 + $0x2a8] sm:$0xff]
        %v563 = vld [vmem:[#allocation2 + $0x2b0] sm:$0xff]
        %v564 = vld [vmem:[#allocation2 + $0x2b8] sm:$0xff]
        %v565 = vld [vmem:[#allocation2 + $0x2c0] sm:$0xff]
        %v566 = vld [vmem:[#allocation2 + $0x2c8] sm:$0xff]
        %v567 = vld [vmem:[#allocation2 + $0x2d0] sm:$0xff]
        %v568 = vld [vmem:[#allocation2 + $0x2d8] sm:$0xff]
        %v569 = vld [vmem:[#allocation2 + $0x2e0] sm:$0xff]
        %v570 = vld [vmem:[#allocation2 + $0x2e8] sm:$0xff]
        %v571 = vld [vmem:[#allocation2 + $0x2f0] sm:$0xff]
        %v572 = vld [vmem:[#allocation2 + $0x2f8] sm:$0xff]
        %v573 = vld [vmem:[#allocation2 + $0x300] sm:$0xff]
        %v574 = vld [vmem:[#allocation2 + $0x308] sm:$0xff]
        %v575 = vld [vmem:[#allocation2 + $0x310] sm:$0xff]
        %v576 = vld [vmem:[#allocation2 + $0x318] sm:$0xff]
        %v577 = vld [vmem:[#allocation2 + $0x320] sm:$0xff]
        %v578 = vld [vmem:[#allocation2 + $0x328] sm:$0xff]
        %v579 = vld [vmem:[#allocation2 + $0x330] sm:$0xff]
        %v580 = vld [vmem:[#allocation2 + $0x338] sm:$0xff]
        %v581 = vld [vmem:[#allocation2 + $0x340] sm:$0xff]
        %v582 = vld [vmem:[#allocation2 + $0x348] sm:$0xff]
        %v583 = vld [vmem:[#allocation2 + $0x350] sm:$0xff]
        %v584 = vld [vmem:[#allocation2 + $0x358] sm:$0xff]
        %v585 = vld [vmem:[#allocation2 + $0x360] sm:$0xff]
        %v586 = vld [vmem:[#allocation2 + $0x368] sm:$0xff]
        %v587 = vld [vmem:[#allocation2 + $0x370] sm:$0xff]
        %v588 = vld [vmem:[#allocation2 + $0x378] sm:$0xff]
        %v589 = vld [vmem:[#allocation2 + $0x380] sm:$0xff]
        %v590 = vld [vmem:[#allocation2 + $0x388] sm:$0xff]
        %v591 = vld [vmem:[#allocation2 + $0x390] sm:$0xff]
        %v592 = vld [vmem:[#allocation2 + $0x398] sm:$0xff]
        %v593 = vld [vmem:[#allocation2 + $0x3a0] sm:$0xff]
        %v594 = vld [vmem:[#allocation2 + $0x3a8] sm:$0xff]
        %v595 = vld [vmem:[#allocation2 + $0x3b0] sm:$0xff]
        %v596 = vld [vmem:[#allocation2 + $0x3b8] sm:$0xff]
        %v597 = vld [vmem:[#allocation2 + $0x3c0] sm:$0xff]
        %v598 = vld [vmem:[#allocation2 + $0x3c8] sm:$0xff]
        %v599 = vld [vmem:[#allocation2 + $0x3d0] sm:$0xff]
        %v600 = vld [vmem:[#allocation2 + $0x3d8] sm:$0xff]
        %v601 = vld [vmem:[#allocation2 + $0x3e0] sm:$0xff]
        %v602 = vld [vmem:[#allocation2 + $0x3e8] sm:$0xff]
        %v603 = vld [vmem:[#allocation2 + $0x3f0] sm:$0xff]
        %v604 = vld [vmem:[#allocation2 + $0x3f8] sm:$0xff]
        %v605 = vld [vmem:[%s263] sm:$0xff]
        %v606 = vld [vmem:[%s263 + $0x8] sm:$0xff]
        %v607 = vld [vmem:[%s263 + $0x10] sm:$0xff]
        %v608 = vld [vmem:[%s263 + $0x18] sm:$0xff]
        %v609 = vld [vmem:[%s263 + $0x20] sm:$0xff]
        %v610 = vld [vmem:[%s263 + $0x28] sm:$0xff]
        %v611 = vld [vmem:[%s263 + $0x30] sm:$0xff]
        %v612 = vld [vmem:[%s263 + $0x38] sm:$0xff]
        %v613 = vld [vmem:[%s263 + $0x40] sm:$0xff]
        %v614 = vld [vmem:[%s263 + $0x48] sm:$0xff]
        %v615 = vld [vmem:[%s263 + $0x50] sm:$0xff]
        %v616 = vld [vmem:[%s263 + $0x58] sm:$0xff]
        %v617 = vld [vmem:[%s263 + $0x60] sm:$0xff]
        %v618 = vld [vmem:[%s263 + $0x68] sm:$0xff]
        %v619 = vld [vmem:[%s263 + $0x70] sm:$0xff]
        %v620 = vld [vmem:[%s263 + $0x78] sm:$0xff]
        %v621 = vld [vmem:[%s263 + $0x80] sm:$0xff]
        %v622 = vld [vmem:[%s263 + $0x88] sm:$0xff]
        %v623 = vld [vmem:[%s263 + $0x90] sm:$0xff]
        %v624 = vld [vmem:[%s263 + $0x98] sm:$0xff]
        %v625 = vld [vmem:[%s263 + $0xa0] sm:$0xff]
        %v626 = vld [vmem:[%s263 + $0xa8] sm:$0xff]
        %v627 = vld [vmem:[%s263 + $0xb0] sm:$0xff]
        %v628 = vld [vmem:[%s263 + $0xb8] sm:$0xff]
        %v629 = vld [vmem:[%s263 + $0xc0] sm:$0xff]
        %v630 = vld [vmem:[%s263 + $0xc8] sm:$0xff]
        %v631 = vld [vmem:[%s263 + $0xd0] sm:$0xff]
        %v632 = vld [vmem:[%s263 + $0xd8] sm:$0xff]
        %v633 = vld [vmem:[%s263 + $0xe0] sm:$0xff]
        %v634 = vld [vmem:[%s263 + $0xe8] sm:$0xff]
        %v635 = vld [vmem:[%s263 + $0xf0] sm:$0xff]
        %v636 = vld [vmem:[%s263 + $0xf8] sm:$0xff]
        %v637 = vld [vmem:[%s272] sm:$0xff]
        %v638 = vld [vmem:[%s272 + $0x8] sm:$0xff]
        %v639 = vld [vmem:[%s272 + $0x10] sm:$0xff]
        %v640 = vld [vmem:[%s272 + $0x18] sm:$0xff]
        %v641 = vld [vmem:[%s272 + $0x20] sm:$0xff]
        %v642 = vld [vmem:[%s272 + $0x28] sm:$0xff]
        %v643 = vld [vmem:[%s272 + $0x30] sm:$0xff]
        %v644 = vld [vmem:[%s272 + $0x38] sm:$0xff]
        %v645 = vld [vmem:[%s272 + $0x40] sm:$0xff]
        %v646 = vld [vmem:[%s272 + $0x48] sm:$0xff]
        %v647 = vld [vmem:[%s272 + $0x50] sm:$0xff]
        %v648 = vld [vmem:[%s272 + $0x58] sm:$0xff]
        %v649 = vld [vmem:[%s272 + $0x60] sm:$0xff]
        %v650 = vld [vmem:[%s272 + $0x68] sm:$0xff]
        %v651 = vld [vmem:[%s272 + $0x70] sm:$0xff]
        %v652 = vld [vmem:[%s272 + $0x78] sm:$0xff]
        %v653 = vld [vmem:[%s272 + $0x80] sm:$0xff]
        %v654 = vld [vmem:[%s272 + $0x88] sm:$0xff]
        %v655 = vld [vmem:[%s272 + $0x90] sm:$0xff]
        %v656 = vld [vmem:[%s272 + $0x98] sm:$0xff]
        %v657 = vld [vmem:[%s272 + $0xa0] sm:$0xff]
        %v658 = vld [vmem:[%s272 + $0xa8] sm:$0xff]
        %v659 = vld [vmem:[%s272 + $0xb0] sm:$0xff]
        %v660 = vld [vmem:[%s272 + $0xb8] sm:$0xff]
        %v661 = vld [vmem:[%s272 + $0xc0] sm:$0xff]
        %v662 = vld [vmem:[%s272 + $0xc8] sm:$0xff]
        %v663 = vld [vmem:[%s272 + $0xd0] sm:$0xff]
        %v664 = vld [vmem:[%s272 + $0xd8] sm:$0xff]
        %v665 = vld [vmem:[%s272 + $0xe0] sm:$0xff]
        %v666 = vld [vmem:[%s272 + $0xe8] sm:$0xff]
        %v667 = vld [vmem:[%s272 + $0xf0] sm:$0xff]
        %v668 = vld [vmem:[%s272 + $0xf8] sm:$0xff]
        %v669 = vld [vmem:[%s272 + $0x100] sm:$0xff]
        %v670 = vld [vmem:[%s272 + $0x108] sm:$0xff]
        %v671 = vld [vmem:[%s272 + $0x110] sm:$0xff]
        %v672 = vld [vmem:[%s272 + $0x118] sm:$0xff]
        %v673 = vld [vmem:[%s272 + $0x120] sm:$0xff]
        %v674 = vld [vmem:[%s272 + $0x128] sm:$0xff]
        %v675 = vld [vmem:[%s272 + $0x130] sm:$0xff]
        %v676 = vld [vmem:[%s272 + $0x138] sm:$0xff]
        %v677 = vld [vmem:[%s272 + $0x140] sm:$0xff]
        %v678 = vld [vmem:[%s272 + $0x148] sm:$0xff]
        %v679 = vld [vmem:[%s272 + $0x150] sm:$0xff]
        %v680 = vld [vmem:[%s272 + $0x158] sm:$0xff]
        %v681 = vld [vmem:[%s272 + $0x160] sm:$0xff]
        %v682 = vld [vmem:[%s272 + $0x168] sm:$0xff]
        %v683 = vld [vmem:[%s272 + $0x170] sm:$0xff]
        %v684 = vld [vmem:[%s272 + $0x178] sm:$0xff]
        %v685 = vld [vmem:[%s272 + $0x180] sm:$0xff]
        %v686 = vld [vmem:[%s272 + $0x188] sm:$0xff]
        %v687 = vld [vmem:[%s272 + $0x190] sm:$0xff]
        %v688 = vld [vmem:[%s272 + $0x198] sm:$0xff]
        %v689 = vld [vmem:[%s272 + $0x1a0] sm:$0xff]
        %v690 = vld [vmem:[%s272 + $0x1a8] sm:$0xff]
        %v691 = vld [vmem:[%s272 + $0x1b0] sm:$0xff]
        %v692 = vld [vmem:[%s272 + $0x1b8] sm:$0xff]
        %v693 = vld [vmem:[%s272 + $0x1c0] sm:$0xff]
        %v694 = vld [vmem:[%s272 + $0x1c8] sm:$0xff]
        %v695 = vld [vmem:[%s272 + $0x1d0] sm:$0xff]
        %v696 = vld [vmem:[%s272 + $0x1d8] sm:$0xff]
        %v697 = vld [vmem:[%s272 + $0x1e0] sm:$0xff]
        %v698 = vld [vmem:[%s272 + $0x1e8] sm:$0xff]
        %v699 = vld [vmem:[%s272 + $0x1f0] sm:$0xff]
        %v700 = vld [vmem:[%s272 + $0x1f8] sm:$0xff]
        %v733 = vunpack.c.l.b16 %v605
        %v734 = vunpack.c.h.b16 %v605
        %v735 = vunpack.c.l.b16 %v606
        %v736 = vunpack.c.h.b16 %v606
        %v737 = vunpack.c.l.b16 %v607
        %v738 = vunpack.c.h.b16 %v607
        %v739 = vunpack.c.l.b16 %v608
        %v740 = vunpack.c.h.b16 %v608
        %v741 = vunpack.c.l.b16 %v609
        %v742 = vunpack.c.h.b16 %v609
        %v743 = vunpack.c.l.b16 %v610
        %v744 = vunpack.c.h.b16 %v610
        %v745 = vunpack.c.l.b16 %v611
        %v746 = vunpack.c.h.b16 %v611
        %v747 = vunpack.c.l.b16 %v612
        %v748 = vunpack.c.h.b16 %v612
        %v749 = vunpack.c.l.b16 %v613
        %v750 = vunpack.c.h.b16 %v613
        %v751 = vunpack.c.l.b16 %v614
        %v752 = vunpack.c.h.b16 %v614
        %v753 = vunpack.c.l.b16 %v615
        %v754 = vunpack.c.h.b16 %v615
        %v755 = vunpack.c.l.b16 %v616
        %v756 = vunpack.c.h.b16 %v616
        %v757 = vunpack.c.l.b16 %v617
        %v758 = vunpack.c.h.b16 %v617
        %v759 = vunpack.c.l.b16 %v618
        %v760 = vunpack.c.h.b16 %v618
        %v761 = vunpack.c.l.b16 %v619
        %v762 = vunpack.c.h.b16 %v619
        %v763 = vunpack.c.l.b16 %v620
        %v764 = vunpack.c.h.b16 %v620
        %v765 = vunpack.c.l.b16 %v621
        %v766 = vunpack.c.h.b16 %v621
        %v767 = vunpack.c.l.b16 %v622
        %v768 = vunpack.c.h.b16 %v622
        %v769 = vunpack.c.l.b16 %v623
        %v770 = vunpack.c.h.b16 %v623
        %v771 = vunpack.c.l.b16 %v624
        %v772 = vunpack.c.h.b16 %v624
        %v773 = vunpack.c.l.b16 %v625
        %v774 = vunpack.c.h.b16 %v625
        %v775 = vunpack.c.l.b16 %v626
        %v776 = vunpack.c.h.b16 %v626
        %v777 = vunpack.c.l.b16 %v627
        %v778 = vunpack.c.h.b16 %v627
        %v779 = vunpack.c.l.b16 %v628
        %v780 = vunpack.c.h.b16 %v628
        %v781 = vunpack.c.l.b16 %v629
        %v782 = vunpack.c.h.b16 %v629
        %v783 = vunpack.c.l.b16 %v630
        %v784 = vunpack.c.h.b16 %v630
        %v785 = vunpack.c.l.b16 %v631
        %v786 = vunpack.c.h.b16 %v631
        %v787 = vunpack.c.l.b16 %v632
        %v788 = vunpack.c.h.b16 %v632
        %v789 = vunpack.c.l.b16 %v633
        %v790 = vunpack.c.h.b16 %v633
        %v791 = vunpack.c.l.b16 %v634
        %v792 = vunpack.c.h.b16 %v634
        %v793 = vunpack.c.l.b16 %v635
        %v794 = vunpack.c.h.b16 %v635
        %v795 = vunpack.c.l.b16 %v636
        %v796 = vunpack.c.h.b16 %v636
        %v797 = vpack.c.b16 %v735, %v733
        %v798 = vpack.c.b16 %v736, %v734
        %v799 = vpack.c.b16 %v739, %v737
        %v800 = vpack.c.b16 %v740, %v738
        %v801 = vpack.c.b16 %v743, %v741
        %v802 = vpack.c.b16 %v744, %v742
        %v803 = vpack.c.b16 %v747, %v745
        %v804 = vpack.c.b16 %v748, %v746
        %v805 = vpack.c.b16 %v751, %v749
        %v806 = vpack.c.b16 %v752, %v750
        %v807 = vpack.c.b16 %v755, %v753
        %v808 = vpack.c.b16 %v756, %v754
        %v809 = vpack.c.b16 %v759, %v757
        %v810 = vpack.c.b16 %v760, %v758
        %v811 = vpack.c.b16 %v763, %v761
        %v812 = vpack.c.b16 %v764, %v762
        %v813 = vpack.c.b16 %v767, %v765
        %v814 = vpack.c.b16 %v768, %v766
        %v815 = vpack.c.b16 %v771, %v769
        %v816 = vpack.c.b16 %v772, %v770
        %v817 = vpack.c.b16 %v775, %v773
        %v818 = vpack.c.b16 %v776, %v774
        %v819 = vpack.c.b16 %v779, %v777
        %v820 = vpack.c.b16 %v780, %v778
        %v821 = vpack.c.b16 %v783, %v781
        %v822 = vpack.c.b16 %v784, %v782
        %v823 = vpack.c.b16 %v787, %v785
        %v824 = vpack.c.b16 %v788, %v786
        %v825 = vpack.c.b16 %v791, %v789
        %v826 = vpack.c.b16 %v792, %v790
        %v827 = vpack.c.b16 %v795, %v793
        %v828 = vpack.c.b16 %v796, %v794
        %v925 = vunpack.c.l.b16 %v637
        %v926 = vunpack.c.h.b16 %v637
        %v927 = vunpack.c.l.b16 %v638
        %v928 = vunpack.c.h.b16 %v638
        %v929 = vunpack.c.l.b16 %v639
        %v930 = vunpack.c.h.b16 %v639
        %v931 = vunpack.c.l.b16 %v640
        %v932 = vunpack.c.h.b16 %v640
        %v933 = vunpack.c.l.b16 %v641
        %v934 = vunpack.c.h.b16 %v641
        %v935 = vunpack.c.l.b16 %v642
        %v936 = vunpack.c.h.b16 %v642
        %v937 = vunpack.c.l.b16 %v643
        %v938 = vunpack.c.h.b16 %v643
        %v939 = vunpack.c.l.b16 %v644
        %v940 = vunpack.c.h.b16 %v644
        %v941 = vunpack.c.l.b16 %v645
        %v942 = vunpack.c.h.b16 %v645
        %v943 = vunpack.c.l.b16 %v646
        %v944 = vunpack.c.h.b16 %v646
        %v945 = vunpack.c.l.b16 %v647
        %v946 = vunpack.c.h.b16 %v647
        %v947 = vunpack.c.l.b16 %v648
        %v948 = vunpack.c.h.b16 %v648
        %v949 = vunpack.c.l.b16 %v649
        %v950 = vunpack.c.h.b16 %v649
        %v951 = vunpack.c.l.b16 %v650
        %v952 = vunpack.c.h.b16 %v650
        %v953 = vunpack.c.l.b16 %v651
        %v954 = vunpack.c.h.b16 %v651
        %v955 = vunpack.c.l.b16 %v652
        %v956 = vunpack.c.h.b16 %v652
        %v957 = vunpack.c.l.b16 %v653
        %v958 = vunpack.c.h.b16 %v653
        %v959 = vunpack.c.l.b16 %v654
        %v960 = vunpack.c.h.b16 %v654
        %v961 = vunpack.c.l.b16 %v655
        %v962 = vunpack.c.h.b16 %v655
        %v963 = vunpack.c.l.b16 %v656
        %v964 = vunpack.c.h.b16 %v656
        %v965 = vunpack.c.l.b16 %v657
        %v966 = vunpack.c.h.b16 %v657
        %v967 = vunpack.c.l.b16 %v658
        %v968 = vunpack.c.h.b16 %v658
        %v969 = vunpack.c.l.b16 %v659
        %v970 = vunpack.c.h.b16 %v659
        %v971 = vunpack.c.l.b16 %v660
        %v972 = vunpack.c.h.b16 %v660
        %v973 = vunpack.c.l.b16 %v661
        %v974 = vunpack.c.h.b16 %v661
        %v975 = vunpack.c.l.b16 %v662
        %v976 = vunpack.c.h.b16 %v662
        %v977 = vunpack.c.l.b16 %v663
        %v978 = vunpack.c.h.b16 %v663
        %v979 = vunpack.c.l.b16 %v664
        %v980 = vunpack.c.h.b16 %v664
        %v981 = vunpack.c.l.b16 %v665
        %v982 = vunpack.c.h.b16 %v665
        %v983 = vunpack.c.l.b16 %v666
        %v984 = vunpack.c.h.b16 %v666
        %v985 = vunpack.c.l.b16 %v667
        %v986 = vunpack.c.h.b16 %v667
        %v987 = vunpack.c.l.b16 %v668
        %v988 = vunpack.c.h.b16 %v668
        %v989 = vunpack.c.l.b16 %v669
        %v990 = vunpack.c.h.b16 %v669
        %v991 = vunpack.c.l.b16 %v670
        %v992 = vunpack.c.h.b16 %v670
        %v993 = vunpack.c.l.b16 %v671
        %v994 = vunpack.c.h.b16 %v671
        %v995 = vunpack.c.l.b16 %v672
        %v996 = vunpack.c.h.b16 %v672
        %v997 = vunpack.c.l.b16 %v673
        %v998 = vunpack.c.h.b16 %v673
        %v999 = vunpack.c.l.b16 %v674
        %v1000 = vunpack.c.h.b16 %v674
        %v1001 = vunpack.c.l.b16 %v675
        %v1002 = vunpack.c.h.b16 %v675
        %v1003 = vunpack.c.l.b16 %v676
        %v1004 = vunpack.c.h.b16 %v676
        %v1005 = vunpack.c.l.b16 %v677
        %v1006 = vunpack.c.h.b16 %v677
        %v1007 = vunpack.c.l.b16 %v678
        %v1008 = vunpack.c.h.b16 %v678
        %v1009 = vunpack.c.l.b16 %v679
        %v1010 = vunpack.c.h.b16 %v679
        %v1011 = vunpack.c.l.b16 %v680
        %v1012 = vunpack.c.h.b16 %v680
        %v1013 = vunpack.c.l.b16 %v681
        %v1014 = vunpack.c.h.b16 %v681
        %v1015 = vunpack.c.l.b16 %v682
        %v1016 = vunpack.c.h.b16 %v682
        %v1017 = vunpack.c.l.b16 %v683
        %v1018 = vunpack.c.h.b16 %v683
        %v1019 = vunpack.c.l.b16 %v684
        %v1020 = vunpack.c.h.b16 %v684
        %v1021 = vunpack.c.l.b16 %v685
        %v1022 = vunpack.c.h.b16 %v685
        %v1023 = vunpack.c.l.b16 %v686
        %v1024 = vunpack.c.h.b16 %v686
        %v1025 = vunpack.c.l.b16 %v687
        %v1026 = vunpack.c.h.b16 %v687
        %v1027 = vunpack.c.l.b16 %v688
        %v1028 = vunpack.c.h.b16 %v688
        %v1029 = vunpack.c.l.b16 %v689
        %v1030 = vunpack.c.h.b16 %v689
        %v1031 = vunpack.c.l.b16 %v690
        %v1032 = vunpack.c.h.b16 %v690
        %v1033 = vunpack.c.l.b16 %v691
        %v1034 = vunpack.c.h.b16 %v691
        %v1035 = vunpack.c.l.b16 %v692
        %v1036 = vunpack.c.h.b16 %v692
        %v1037 = vunpack.c.l.b16 %v693
        %v1038 = vunpack.c.h.b16 %v693
        %v1039 = vunpack.c.l.b16 %v694
        %v1040 = vunpack.c.h.b16 %v694
        %v1041 = vunpack.c.l.b16 %v695
        %v1042 = vunpack.c.h.b16 %v695
        %v1043 = vunpack.c.l.b16 %v696
        %v1044 = vunpack.c.h.b16 %v696
        %v1045 = vunpack.c.l.b16 %v697
        %v1046 = vunpack.c.h.b16 %v697
        %v1047 = vunpack.c.l.b16 %v698
        %v1048 = vunpack.c.h.b16 %v698
        %v1049 = vunpack.c.l.b16 %v699
        %v1050 = vunpack.c.h.b16 %v699
        %v1051 = vunpack.c.l.b16 %v700
        %v1052 = vunpack.c.h.b16 %v700
        %v1053 = vpack.c.b16 %v929, %v925
        %v1054 = vpack.c.b16 %v930, %v926
        %v1055 = vpack.c.b16 %v931, %v927
        %v1056 = vpack.c.b16 %v932, %v928
        %v1057 = vpack.c.b16 %v937, %v933
        %v1058 = vpack.c.b16 %v938, %v934
        %v1059 = vpack.c.b16 %v939, %v935
        %v1060 = vpack.c.b16 %v940, %v936
        %v1061 = vpack.c.b16 %v945, %v941
        %v1062 = vpack.c.b16 %v946, %v942
        %v1063 = vpack.c.b16 %v947, %v943
        %v1064 = vpack.c.b16 %v948, %v944
        %v1065 = vpack.c.b16 %v953, %v949
        %v1066 = vpack.c.b16 %v954, %v950
        %v1067 = vpack.c.b16 %v955, %v951
        %v1068 = vpack.c.b16 %v956, %v952
        %v1069 = vpack.c.b16 %v961, %v957
        %v1070 = vpack.c.b16 %v962, %v958
        %v1071 = vpack.c.b16 %v963, %v959
        %v1072 = vpack.c.b16 %v964, %v960
        %v1073 = vpack.c.b16 %v969, %v965
        %v1074 = vpack.c.b16 %v970, %v966
        %v1075 = vpack.c.b16 %v971, %v967
        %v1076 = vpack.c.b16 %v972, %v968
        %v1077 = vpack.c.b16 %v977, %v973
        %v1078 = vpack.c.b16 %v978, %v974
        %v1079 = vpack.c.b16 %v979, %v975
        %v1080 = vpack.c.b16 %v980, %v976
        %v1081 = vpack.c.b16 %v985, %v981
        %v1082 = vpack.c.b16 %v986, %v982
        %v1083 = vpack.c.b16 %v987, %v983
        %v1084 = vpack.c.b16 %v988, %v984
        %v1085 = vpack.c.b16 %v993, %v989
        %v1086 = vpack.c.b16 %v994, %v990
        %v1087 = vpack.c.b16 %v995, %v991
        %v1088 = vpack.c.b16 %v996, %v992
        %v1089 = vpack.c.b16 %v1001, %v997
        %v1090 = vpack.c.b16 %v1002, %v998
        %v1091 = vpack.c.b16 %v1003, %v999
        %v1092 = vpack.c.b16 %v1004, %v1000
        %v1093 = vpack.c.b16 %v1009, %v1005
        %v1094 = vpack.c.b16 %v1010, %v1006
        %v1095 = vpack.c.b16 %v1011, %v1007
        %v1096 = vpack.c.b16 %v1012, %v1008
        %v1097 = vpack.c.b16 %v1017, %v1013
        %v1098 = vpack.c.b16 %v1018, %v1014
        %v1099 = vpack.c.b16 %v1019, %v1015
        %v1100 = vpack.c.b16 %v1020, %v1016
        %v1101 = vpack.c.b16 %v1025, %v1021
        %v1102 = vpack.c.b16 %v1026, %v1022
        %v1103 = vpack.c.b16 %v1027, %v1023
        %v1104 = vpack.c.b16 %v1028, %v1024
        %v1105 = vpack.c.b16 %v1033, %v1029
        %v1106 = vpack.c.b16 %v1034, %v1030
        %v1107 = vpack.c.b16 %v1035, %v1031
        %v1108 = vpack.c.b16 %v1036, %v1032
        %v1109 = vpack.c.b16 %v1041, %v1037
        %v1110 = vpack.c.b16 %v1042, %v1038
        %v1111 = vpack.c.b16 %v1043, %v1039
        %v1112 = vpack.c.b16 %v1044, %v1040
        %v1113 = vpack.c.b16 %v1049, %v1045
        %v1114 = vpack.c.b16 %v1050, %v1046
        %v1115 = vpack.c.b16 %v1051, %v1047
        %v1116 = vpack.c.b16 %v1052, %v1048
        %1181 = vmatprep.subr.bf16.mxu0 %v1054
        %1182 = vmatpush1.bf16.msra.mxu0 %v1053
        %1183 = vmatprep.subr.bf16.mxu0 %v1058
        %1184 = vmatpush1.bf16.msra.mxu0 %v1057
        %1185 = vmatprep.subr.bf16.mxu0 %v1062
        %1186 = vmatpush1.bf16.msra.mxu0 %v1061
        %1187 = vmatprep.subr.bf16.mxu0 %v1066
        %1188 = vmatpush1.bf16.msra.mxu0 %v1065
        %1189 = vmatprep.subr.bf16.mxu0 %v1070
        %1190 = vmatpush1.bf16.msra.mxu0 %v1069
        %1191 = vmatprep.subr.bf16.mxu0 %v1074
        %1192 = vmatpush1.bf16.msra.mxu0 %v1073
        %1193 = vmatprep.subr.bf16.mxu0 %v1078
        %1194 = vmatpush1.bf16.msra.mxu0 %v1077
        %1195 = vmatprep.subr.bf16.mxu0 %v1082
        %1196 = vmatpush1.bf16.msra.mxu0 %v1081
        %1197 = vmatprep.subr.bf16.mxu0 %v1086
        %1198 = vmatpush1.bf16.msra.mxu0 %v1085
        %1199 = vmatprep.subr.bf16.mxu0 %v1090
        %1200 = vmatpush1.bf16.msra.mxu0 %v1089
        %1201 = vmatprep.subr.bf16.mxu0 %v1094
        %1202 = vmatpush1.bf16.msra.mxu0 %v1093
        %1203 = vmatprep.subr.bf16.mxu0 %v1098
        %1204 = vmatpush1.bf16.msra.mxu0 %v1097
        %1205 = vmatprep.subr.bf16.mxu0 %v1102
        %1206 = vmatpush1.bf16.msra.mxu0 %v1101
        %1207 = vmatprep.subr.bf16.mxu0 %v1106
        %1208 = vmatpush1.bf16.msra.mxu0 %v1105
        %1209 = vmatprep.subr.bf16.mxu0 %v1110
        %1210 = vmatpush1.bf16.msra.mxu0 %v1109
        %1211 = vmatprep.subr.bf16.mxu0 %v1114
        %1212 = vmatpush1.bf16.msra.mxu0 %v1113
        %1213 = vmatprep.mubr.bf16.mxu0 %v798
        %1214 = vmatmul.mubr.bf16.gmra.mrb[0].mxu0 %v797
        %v1215 = vpop.f32.mrb[0].mxu0
        %v1216 = vadd.f32 0.0, %v1215
        %v1217 = vpop.f32.mrb[0].mxu0
        %v1218 = vadd.f32 0.0, %v1217
        %v1219 = vpop.f32.mrb[0].mxu0
        %v1220 = vadd.f32 0.0, %v1219
        %v1221 = vpop.f32.mrb[0].mxu0
        %v1222 = vadd.f32 0.0, %v1221
        %1223 = vmatprep.mubr.bf16.mxu0 %v800
        %1224 = vmatmul.mubr.bf16.gmra.mrb[0].mxu0 %v799
        %v1225 = vpop.f32.mrb[0].mxu0
        %v1226 = vadd.f32 0.0, %v1225
        %v1227 = vpop.f32.mrb[0].mxu0
        %v1228 = vadd.f32 0.0, %v1227
        %v1229 = vpop.f32.mrb[0].mxu0
        %v1230 = vadd.f32 0.0, %v1229
        %v1231 = vpop.f32.mrb[0].mxu0
        %v1232 = vadd.f32 0.0, %v1231
        %1233 = vmatprep.mubr.bf16.mxu0 %v802
        %1234 = vmatmul.mubr.bf16.gmra.mrb[0].mxu0 %v801
        %v1235 = vpop.f32.mrb[0].mxu0
        %v1236 = vadd.f32 0.0, %v1235
        %v1237 = vpop.f32.mrb[0].mxu0
        %v1238 = vadd.f32 0.0, %v1237
        %v1239 = vpop.f32.mrb[0].mxu0
        %v1240 = vadd.f32 0.0, %v1239
        %v1241 = vpop.f32.mrb[0].mxu0
        %v1242 = vadd.f32 0.0, %v1241
        %1243 = vmatprep.mubr.bf16.mxu0 %v804
        %1244 = vmatmul.mubr.bf16.gmra.mrb[0].mxu0 %v803
        %v1245 = vpop.f32.mrb[0].mxu0
        %v1246 = vadd.f32 0.0, %v1245
        %v1247 = vpop.f32.mrb[0].mxu0
        %v1248 = vadd.f32 0.0, %v1247
        %v1249 = vpop.f32.mrb[0].mxu0
        %v1250 = vadd.f32 0.0, %v1249
        %v1251 = vpop.f32.mrb[0].mxu0
        %v1252 = vadd.f32 0.0, %v1251
        %1253 = vmatprep.mubr.bf16.mxu0 %v806
        %1254 = vmatmul.mubr.bf16.gmra.mrb[0].mxu0 %v805
        %v1255 = vpop.f32.mrb[0].mxu0
        %v1256 = vadd.f32 0.0, %v1255
        %v1257 = vpop.f32.mrb[0].mxu0
        %v1258 = vadd.f32 0.0, %v1257
        %v1259 = vpop.f32.mrb[0].mxu0
        %v1260 = vadd.f32 0.0, %v1259
        %v1261 = vpop.f32.mrb[0].mxu0
        %v1262 = vadd.f32 0.0, %v1261
        %1263 = vmatprep.mubr.bf16.mxu0 %v808
        %1264 = vmatmul.mubr.bf16.gmra.mrb[0].mxu0 %v807
        %v1265 = vpop.f32.mrb[0].mxu0
        %v1266 = vadd.f32 0.0, %v1265
        %v1267 = vpop.f32.mrb[0].mxu0
        %v1268 = vadd.f32 0.0, %v1267
        %v1269 = vpop.f32.mrb[0].mxu0
        %v1270 = vadd.f32 0.0, %v1269
        %v1271 = vpop.f32.mrb[0].mxu0
        %v1272 = vadd.f32 0.0, %v1271
        %1273 = vmatprep.mubr.bf16.mxu0 %v810
        %1274 = vmatmul.mubr.bf16.gmra.mrb[0].mxu0 %v809
        %v1275 = vpop.f32.mrb[0].mxu0
        %v1276 = vadd.f32 0.0, %v1275
        %v1277 = vpop.f32.mrb[0].mxu0
        %v1278 = vadd.f32 0.0, %v1277
        %v1279 = vpop.f32.mrb[0].mxu0
        %v1280 = vadd.f32 0.0, %v1279
        %v1281 = vpop.f32.mrb[0].mxu0
        %v1282 = vadd.f32 0.0, %v1281
        %1283 = vmatprep.mubr.bf16.mxu0 %v812
        %1284 = vmatmul.mubr.bf16.gmra.mrb[0].mxu0 %v811
        %v1285 = vpop.f32.mrb[0].mxu0
        %v1286 = vadd.f32 0.0, %v1285
        %v1287 = vpop.f32.mrb[0].mxu0
        %v1288 = vadd.f32 0.0, %v1287
        %v1289 = vpop.f32.mrb[0].mxu0
        %v1290 = vadd.f32 0.0, %v1289
        %v1291 = vpop.f32.mrb[0].mxu0
        %v1292 = vadd.f32 0.0, %v1291
        %1293 = vmatprep.mubr.bf16.mxu0 %v814
        %1294 = vmatmul.mubr.bf16.gmra.mrb[0].mxu0 %v813
        %v1295 = vpop.f32.mrb[0].mxu0
        %v1296 = vadd.f32 0.0, %v1295
        %v1297 = vpop.f32.mrb[0].mxu0
        %v1298 = vadd.f32 0.0, %v1297
        %v1299 = vpop.f32.mrb[0].mxu0
        %v1300 = vadd.f32 0.0, %v1299
        %v1301 = vpop.f32.mrb[0].mxu0
        %v1302 = vadd.f32 0.0, %v1301
        %1303 = vmatprep.mubr.bf16.mxu0 %v816
        %1304 = vmatmul.mubr.bf16.gmra.mrb[0].mxu0 %v815
        %v1305 = vpop.f32.mrb[0].mxu0
        %v1306 = vadd.f32 0.0, %v1305
        %v1307 = vpop.f32.mrb[0].mxu0
        %v1308 = vadd.f32 0.0, %v1307
        %v1309 = vpop.f32.mrb[0].mxu0
        %v1310 = vadd.f32 0.0, %v1309
        %v1311 = vpop.f32.mrb[0].mxu0
        %v1312 = vadd.f32 0.0, %v1311
        %1313 = vmatprep.mubr.bf16.mxu0 %v818
        %1314 = vmatmul.mubr.bf16.gmra.mrb[0].mxu0 %v817
        %v1315 = vpop.f32.mrb[0].mxu0
        %v1316 = vadd.f32 0.0, %v1315
        %v1317 = vpop.f32.mrb[0].mxu0
        %v1318 = vadd.f32 0.0, %v1317
        %v1319 = vpop.f32.mrb[0].mxu0
        %v1320 = vadd.f32 0.0, %v1319
        %v1321 = vpop.f32.mrb[0].mxu0
        %v1322 = vadd.f32 0.0, %v1321
        %1323 = vmatprep.mubr.bf16.mxu0 %v820
        %1324 = vmatmul.mubr.bf16.gmra.mrb[0].mxu0 %v819
        %v1325 = vpop.f32.mrb[0].mxu0
        %v1326 = vadd.f32 0.0, %v1325
        %v1327 = vpop.f32.mrb[0].mxu0
        %v1328 = vadd.f32 0.0, %v1327
        %v1329 = vpop.f32.mrb[0].mxu0
        %v1330 = vadd.f32 0.0, %v1329
        %v1331 = vpop.f32.mrb[0].mxu0
        %v1332 = vadd.f32 0.0, %v1331
        %1333 = vmatprep.mubr.bf16.mxu0 %v822
        %1334 = vmatmul.mubr.bf16.gmra.mrb[0].mxu0 %v821
        %v1335 = vpop.f32.mrb[0].mxu0
        %v1336 = vadd.f32 0.0, %v1335
        %v1337 = vpop.f32.mrb[0].mxu0
        %v1338 = vadd.f32 0.0, %v1337
        %v1339 = vpop.f32.mrb[0].mxu0
        %v1340 = vadd.f32 0.0, %v1339
        %v1341 = vpop.f32.mrb[0].mxu0
        %v1342 = vadd.f32 0.0, %v1341
        %1343 = vmatprep.mubr.bf16.mxu0 %v824
        %1344 = vmatmul.mubr.bf16.gmra.mrb[0].mxu0 %v823
        %v1345 = vpop.f32.mrb[0].mxu0
        %v1346 = vadd.f32 0.0, %v1345
        %v1347 = vpop.f32.mrb[0].mxu0
        %v1348 = vadd.f32 0.0, %v1347
        %v1349 = vpop.f32.mrb[0].mxu0
        %v1350 = vadd.f32 0.0, %v1349
        %v1351 = vpop.f32.mrb[0].mxu0
        %v1352 = vadd.f32 0.0, %v1351
        %1353 = vmatprep.mubr.bf16.mxu0 %v826
        %1354 = vmatmul.mubr.bf16.gmra.mrb[0].mxu0 %v825
        %v1355 = vpop.f32.mrb[0].mxu0
        %v1356 = vadd.f32 0.0, %v1355
        %v1357 = vpop.f32.mrb[0].mxu0
        %v1358 = vadd.f32 0.0, %v1357
        %v1359 = vpop.f32.mrb[0].mxu0
        %v1360 = vadd.f32 0.0, %v1359
        %v1361 = vpop.f32.mrb[0].mxu0
        %v1362 = vadd.f32 0.0, %v1361
        %1363 = vmatprep.mubr.bf16.mxu0 %v828
        %1364 = vmatmul.mubr.bf16.gmra.mrb[0].mxu0 %v827
        %v1365 = vpop.f32.mrb[0].mxu0
        %v1366 = vadd.f32 0.0, %v1365
        %v1367 = vpop.f32.mrb[0].mxu0
        %v1368 = vadd.f32 0.0, %v1367
        %v1369 = vpop.f32.mrb[0].mxu0
        %v1370 = vadd.f32 0.0, %v1369
        %v1371 = vpop.f32.mrb[0].mxu0
        %v1372 = vadd.f32 0.0, %v1371
        %1373 = vdwg.mxu0
        %1374 = vmatprep.subr.bf16.mxu0 %v1056
        %1375 = vmatpush1.bf16.msra.mxu0 %v1055
        %1376 = vmatprep.subr.bf16.mxu0 %v1060
        %1377 = vmatpush1.bf16.msra.mxu0 %v1059
        %1378 = vmatprep.subr.bf16.mxu0 %v1064
        %1379 = vmatpush1.bf16.msra.mxu0 %v1063
        %1380 = vmatprep.subr.bf16.mxu0 %v1068
        %1381 = vmatpush1.bf16.msra.mxu0 %v1067
        %1382 = vmatprep.subr.bf16.mxu0 %v1072
        %1383 = vmatpush1.bf16.msra.mxu0 %v1071
        %1384 = vmatprep.subr.bf16.mxu0 %v1076
        %1385 = vmatpush1.bf16.msra.mxu0 %v1075
        %1386 = vmatprep.subr.bf16.mxu0 %v1080
        %1387 = vmatpush1.bf16.msra.mxu0 %v1079
        %1388 = vmatprep.subr.bf16.mxu0 %v1084
        %1389 = vmatpush1.bf16.msra.mxu0 %v1083
        %1390 = vmatprep.subr.bf16.mxu0 %v1088
        %1391 = vmatpush1.bf16.msra.mxu0 %v1087
        %1392 = vmatprep.subr.bf16.mxu0 %v1092
        %1393 = vmatpush1.bf16.msra.mxu0 %v1091
        %1394 = vmatprep.subr.bf16.mxu0 %v1096
        %1395 = vmatpush1.bf16.msra.mxu0 %v1095
        %1396 = vmatprep.subr.bf16.mxu0 %v1100
        %1397 = vmatpush1.bf16.msra.mxu0 %v1099
        %1398 = vmatprep.subr.bf16.mxu0 %v1104
        %1399 = vmatpush1.bf16.msra.mxu0 %v1103
        %1400 = vmatprep.subr.bf16.mxu0 %v1108
        %1401 = vmatpush1.bf16.msra.mxu0 %v1107
        %1402 = vmatprep.subr.bf16.mxu0 %v1112
        %1403 = vmatpush1.bf16.msra.mxu0 %v1111
        %1404 = vmatprep.subr.bf16.mxu0 %v1116
        %1405 = vmatpush1.bf16.msra.mxu0 %v1115
        %1406 = vmatprep.mubr.bf16.mxu0 %v798
        %1407 = vmatmul.mubr.bf16.gmra.mrb[0].mxu0 %v797
        %v1408 = vpop.f32.mrb[0].mxu0
        %v1409 = vadd.f32 0.0, %v1408
        %v1410 = vpop.f32.mrb[0].mxu0
        %v1411 = vadd.f32 0.0, %v1410
        %v1412 = vpop.f32.mrb[0].mxu0
        %v1413 = vadd.f32 0.0, %v1412
        %v1414 = vpop.f32.mrb[0].mxu0
        %v1415 = vadd.f32 0.0, %v1414
        %1416 = vmatprep.mubr.bf16.mxu0 %v800
        %1417 = vmatmul.mubr.bf16.gmra.mrb[0].mxu0 %v799
        %v1418 = vpop.f32.mrb[0].mxu0
        %v1419 = vadd.f32 0.0, %v1418
        %v1420 = vpop.f32.mrb[0].mxu0
        %v1421 = vadd.f32 0.0, %v1420
        %v1422 = vpop.f32.mrb[0].mxu0
        %v1423 = vadd.f32 0.0, %v1422
        %v1424 = vpop.f32.mrb[0].mxu0
        %v1425 = vadd.f32 0.0, %v1424
        %1426 = vmatprep.mubr.bf16.mxu0 %v802
        %1427 = vmatmul.mubr.bf16.gmra.mrb[0].mxu0 %v801
        %v1428 = vpop.f32.mrb[0].mxu0
        %v1429 = vadd.f32 0.0, %v1428
        %v1430 = vpop.f32.mrb[0].mxu0
        %v1431 = vadd.f32 0.0, %v1430
        %v1432 = vpop.f32.mrb[0].mxu0
        %v1433 = vadd.f32 0.0, %v1432
        %v1434 = vpop.f32.mrb[0].mxu0
        %v1435 = vadd.f32 0.0, %v1434
        %1436 = vmatprep.mubr.bf16.mxu0 %v804
        %1437 = vmatmul.mubr.bf16.gmra.mrb[0].mxu0 %v803
        %v1438 = vpop.f32.mrb[0].mxu0
        %v1439 = vadd.f32 0.0, %v1438
        %v1440 = vpop.f32.mrb[0].mxu0
        %v1441 = vadd.f32 0.0, %v1440
        %v1442 = vpop.f32.mrb[0].mxu0
        %v1443 = vadd.f32 0.0, %v1442
        %v1444 = vpop.f32.mrb[0].mxu0
        %v1445 = vadd.f32 0.0, %v1444
        %1446 = vmatprep.mubr.bf16.mxu0 %v806
        %1447 = vmatmul.mubr.bf16.gmra.mrb[0].mxu0 %v805
        %v1448 = vpop.f32.mrb[0].mxu0
        %v1449 = vadd.f32 0.0, %v1448
        %v1450 = vpop.f32.mrb[0].mxu0
        %v1451 = vadd.f32 0.0, %v1450
        %v1452 = vpop.f32.mrb[0].mxu0
        %v1453 = vadd.f32 0.0, %v1452
        %v1454 = vpop.f32.mrb[0].mxu0
        %v1455 = vadd.f32 0.0, %v1454
        %1456 = vmatprep.mubr.bf16.mxu0 %v808
        %1457 = vmatmul.mubr.bf16.gmra.mrb[0].mxu0 %v807
        %v1458 = vpop.f32.mrb[0].mxu0
        %v1459 = vadd.f32 0.0, %v1458
        %v1460 = vpop.f32.mrb[0].mxu0
        %v1461 = vadd.f32 0.0, %v1460
        %v1462 = vpop.f32.mrb[0].mxu0
        %v1463 = vadd.f32 0.0, %v1462
        %v1464 = vpop.f32.mrb[0].mxu0
        %v1465 = vadd.f32 0.0, %v1464
        %1466 = vmatprep.mubr.bf16.mxu0 %v810
        %1467 = vmatmul.mubr.bf16.gmra.mrb[0].mxu0 %v809
        %v1468 = vpop.f32.mrb[0].mxu0
        %v1469 = vadd.f32 0.0, %v1468
        %v1470 = vpop.f32.mrb[0].mxu0
        %v1471 = vadd.f32 0.0, %v1470
        %v1472 = vpop.f32.mrb[0].mxu0
        %v1473 = vadd.f32 0.0, %v1472
        %v1474 = vpop.f32.mrb[0].mxu0
        %v1475 = vadd.f32 0.0, %v1474
        %1476 = vmatprep.mubr.bf16.mxu0 %v812
        %1477 = vmatmul.mubr.bf16.gmra.mrb[0].mxu0 %v811
        %v1478 = vpop.f32.mrb[0].mxu0
        %v1479 = vadd.f32 0.0, %v1478
        %v1480 = vpop.f32.mrb[0].mxu0
        %v1481 = vadd.f32 0.0, %v1480
        %v1482 = vpop.f32.mrb[0].mxu0
        %v1483 = vadd.f32 0.0, %v1482
        %v1484 = vpop.f32.mrb[0].mxu0
        %v1485 = vadd.f32 0.0, %v1484
        %1486 = vmatprep.mubr.bf16.mxu0 %v814
        %1487 = vmatmul.mubr.bf16.gmra.mrb[0].mxu0 %v813
        %v1488 = vpop.f32.mrb[0].mxu0
        %v1489 = vadd.f32 0.0, %v1488
        %v1490 = vpop.f32.mrb[0].mxu0
        %v1491 = vadd.f32 0.0, %v1490
        %v1492 = vpop.f32.mrb[0].mxu0
        %v1493 = vadd.f32 0.0, %v1492
        %v1494 = vpop.f32.mrb[0].mxu0
        %v1495 = vadd.f32 0.0, %v1494
        %1496 = vmatprep.mubr.bf16.mxu0 %v816
        %1497 = vmatmul.mubr.bf16.gmra.mrb[0].mxu0 %v815
        %v1498 = vpop.f32.mrb[0].mxu0
        %v1499 = vadd.f32 0.0, %v1498
        %v1500 = vpop.f32.mrb[0].mxu0
        %v1501 = vadd.f32 0.0, %v1500
        %v1502 = vpop.f32.mrb[0].mxu0
        %v1503 = vadd.f32 0.0, %v1502
        %v1504 = vpop.f32.mrb[0].mxu0
        %v1505 = vadd.f32 0.0, %v1504
        %1506 = vmatprep.mubr.bf16.mxu0 %v818
        %1507 = vmatmul.mubr.bf16.gmra.mrb[0].mxu0 %v817
        %v1508 = vpop.f32.mrb[0].mxu0
        %v1509 = vadd.f32 0.0, %v1508
        %v1510 = vpop.f32.mrb[0].mxu0
        %v1511 = vadd.f32 0.0, %v1510
        %v1512 = vpop.f32.mrb[0].mxu0
        %v1513 = vadd.f32 0.0, %v1512
        %v1514 = vpop.f32.mrb[0].mxu0
        %v1515 = vadd.f32 0.0, %v1514
        %1516 = vmatprep.mubr.bf16.mxu0 %v820
        %1517 = vmatmul.mubr.bf16.gmra.mrb[0].mxu0 %v819
        %v1518 = vpop.f32.mrb[0].mxu0
        %v1519 = vadd.f32 0.0, %v1518
        %v1520 = vpop.f32.mrb[0].mxu0
        %v1521 = vadd.f32 0.0, %v1520
        %v1522 = vpop.f32.mrb[0].mxu0
        %v1523 = vadd.f32 0.0, %v1522
        %v1524 = vpop.f32.mrb[0].mxu0
        %v1525 = vadd.f32 0.0, %v1524
        %1526 = vmatprep.mubr.bf16.mxu0 %v822
        %1527 = vmatmul.mubr.bf16.gmra.mrb[0].mxu0 %v821
        %v1528 = vpop.f32.mrb[0].mxu0
        %v1529 = vadd.f32 0.0, %v1528
        %v1530 = vpop.f32.mrb[0].mxu0
        %v1531 = vadd.f32 0.0, %v1530
        %v1532 = vpop.f32.mrb[0].mxu0
        %v1533 = vadd.f32 0.0, %v1532
        %v1534 = vpop.f32.mrb[0].mxu0
        %v1535 = vadd.f32 0.0, %v1534
        %1536 = vmatprep.mubr.bf16.mxu0 %v824
        %1537 = vmatmul.mubr.bf16.gmra.mrb[0].mxu0 %v823
        %v1538 = vpop.f32.mrb[0].mxu0
        %v1539 = vadd.f32 0.0, %v1538
        %v1540 = vpop.f32.mrb[0].mxu0
        %v1541 = vadd.f32 0.0, %v1540
        %v1542 = vpop.f32.mrb[0].mxu0
        %v1543 = vadd.f32 0.0, %v1542
        %v1544 = vpop.f32.mrb[0].mxu0
        %v1545 = vadd.f32 0.0, %v1544
        %1546 = vmatprep.mubr.bf16.mxu0 %v826
        %1547 = vmatmul.mubr.bf16.gmra.mrb[0].mxu0 %v825
        %v1548 = vpop.f32.mrb[0].mxu0
        %v1549 = vadd.f32 0.0, %v1548
        %v1550 = vpop.f32.mrb[0].mxu0
        %v1551 = vadd.f32 0.0, %v1550
        %v1552 = vpop.f32.mrb[0].mxu0
        %v1553 = vadd.f32 0.0, %v1552
        %v1554 = vpop.f32.mrb[0].mxu0
        %v1555 = vadd.f32 0.0, %v1554
        %1556 = vmatprep.mubr.bf16.mxu0 %v828
        %1557 = vmatmul.mubr.bf16.gmra.mrb[0].mxu0 %v827
        %v1558 = vpop.f32.mrb[0].mxu0
        %v1559 = vadd.f32 0.0, %v1558
        %v1560 = vpop.f32.mrb[0].mxu0
        %v1561 = vadd.f32 0.0, %v1560
        %v1562 = vpop.f32.mrb[0].mxu0
        %v1563 = vadd.f32 0.0, %v1562
        %v1564 = vpop.f32.mrb[0].mxu0
        %v1565 = vadd.f32 0.0, %v1564
        %1566 = vdwg.mxu0
        %v1567 = vadd.f32 %v477, %v1216
        %v1568 = vadd.f32 %v478, %v1218
        %v1569 = vadd.f32 %v479, %v1409
        %v1570 = vadd.f32 %v480, %v1411
        %v1571 = vadd.f32 %v481, %v1220
        %v1572 = vadd.f32 %v482, %v1222
        %v1573 = vadd.f32 %v483, %v1413
        %v1574 = vadd.f32 %v484, %v1415
        %v1575 = vadd.f32 %v485, %v1226
        %v1576 = vadd.f32 %v486, %v1228
        %v1577 = vadd.f32 %v487, %v1419
        %v1578 = vadd.f32 %v488, %v1421
        %v1579 = vadd.f32 %v489, %v1230
        %v1580 = vadd.f32 %v490, %v1232
        %v1581 = vadd.f32 %v491, %v1423
        %v1582 = vadd.f32 %v492, %v1425
        %v1583 = vadd.f32 %v493, %v1236
        %v1584 = vadd.f32 %v494, %v1238
        %v1585 = vadd.f32 %v495, %v1429
        %v1586 = vadd.f32 %v496, %v1431
        %v1587 = vadd.f32 %v497, %v1240
        %v1588 = vadd.f32 %v498, %v1242
        %v1589 = vadd.f32 %v499, %v1433
        %v1590 = vadd.f32 %v500, %v1435
        %v1591 = vadd.f32 %v501, %v1246
        %v1592 = vadd.f32 %v502, %v1248
        %v1593 = vadd.f32 %v503, %v1439
        %v1594 = vadd.f32 %v504, %v1441
        %v1595 = vadd.f32 %v505, %v1250
        %v1596 = vadd.f32 %v506, %v1252
        %v1597 = vadd.f32 %v507, %v1443
        %v1598 = vadd.f32 %v508, %v1445
        %v1599 = vadd.f32 %v509, %v1256
        %v1600 = vadd.f32 %v510, %v1258
        %v1601 = vadd.f32 %v511, %v1449
        %v1602 = vadd.f32 %v512, %v1451
        %v1603 = vadd.f32 %v513, %v1260
        %v1604 = vadd.f32 %v514, %v1262
        %v1605 = vadd.f32 %v515, %v1453
        %v1606 = vadd.f32 %v516, %v1455
        %v1607 = vadd.f32 %v517, %v1266
        %v1608 = vadd.f32 %v518, %v1268
        %v1609 = vadd.f32 %v519, %v1459
        %v1610 = vadd.f32 %v520, %v1461
        %v1611 = vadd.f32 %v521, %v1270
        %v1612 = vadd.f32 %v522, %v1272
        %v1613 = vadd.f32 %v523, %v1463
        %v1614 = vadd.f32 %v524, %v1465
        %v1615 = vadd.f32 %v525, %v1276
        %v1616 = vadd.f32 %v526, %v1278
        %v1617 = vadd.f32 %v527, %v1469
        %v1618 = vadd.f32 %v528, %v1471
        %v1619 = vadd.f32 %v529, %v1280
        %v1620 = vadd.f32 %v530, %v1282
        %v1621 = vadd.f32 %v531, %v1473
        %v1622 = vadd.f32 %v532, %v1475
        %v1623 = vadd.f32 %v533, %v1286
        %v1624 = vadd.f32 %v534, %v1288
        %v1625 = vadd.f32 %v535, %v1479
        %v1626 = vadd.f32 %v536, %v1481
        %v1627 = vadd.f32 %v537, %v1290
        %v1628 = vadd.f32 %v538, %v1292
        %v1629 = vadd.f32 %v539, %v1483
        %v1630 = vadd.f32 %v540, %v1485
        %v1631 = vadd.f32 %v541, %v1296
        %v1632 = vadd.f32 %v542, %v1298
        %v1633 = vadd.f32 %v543, %v1489
        %v1634 = vadd.f32 %v544, %v1491
        %v1635 = vadd.f32 %v545, %v1300
        %v1636 = vadd.f32 %v546, %v1302
        %v1637 = vadd.f32 %v547, %v1493
        %v1638 = vadd.f32 %v548, %v1495
        %v1639 = vadd.f32 %v549, %v1306
        %v1640 = vadd.f32 %v550, %v1308
        %v1641 = vadd.f32 %v551, %v1499
        %v1642 = vadd.f32 %v552, %v1501
        %v1643 = vadd.f32 %v553, %v1310
        %v1644 = vadd.f32 %v554, %v1312
        %v1645 = vadd.f32 %v555, %v1503
        %v1646 = vadd.f32 %v556, %v1505
        %v1647 = vadd.f32 %v557, %v1316
        %v1648 = vadd.f32 %v558, %v1318
        %v1649 = vadd.f32 %v559, %v1509
        %v1650 = vadd.f32 %v560, %v1511
        %v1651 = vadd.f32 %v561, %v1320
        %v1652 = vadd.f32 %v562, %v1322
        %v1653 = vadd.f32 %v563, %v1513
        %v1654 = vadd.f32 %v564, %v1515
        %v1655 = vadd.f32 %v565, %v1326
        %v1656 = vadd.f32 %v566, %v1328
        %v1657 = vadd.f32 %v567, %v1519
        %v1658 = vadd.f32 %v568, %v1521
        %v1659 = vadd.f32 %v569, %v1330
        %v1660 = vadd.f32 %v570, %v1332
        %v1661 = vadd.f32 %v571, %v1523
        %v1662 = vadd.f32 %v572, %v1525
        %v1663 = vadd.f32 %v573, %v1336
        %v1664 = vadd.f32 %v574, %v1338
        %v1665 = vadd.f32 %v575, %v1529
        %v1666 = vadd.f32 %v576, %v1531
        %v1667 = vadd.f32 %v577, %v1340
        %v1668 = vadd.f32 %v578, %v1342
        %v1669 = vadd.f32 %v579, %v1533
        %v1670 = vadd.f32 %v580, %v1535
        %v1671 = vadd.f32 %v581, %v1346
        %v1672 = vadd.f32 %v582, %v1348
        %v1673 = vadd.f32 %v583, %v1539
        %v1674 = vadd.f32 %v584, %v1541
        %v1675 = vadd.f32 %v585, %v1350
        %v1676 = vadd.f32 %v586, %v1352
        %v1677 = vadd.f32 %v587, %v1543
        %v1678 = vadd.f32 %v588, %v1545
        %v1679 = vadd.f32 %v589, %v1356
        %v1680 = vadd.f32 %v590, %v1358
        %v1681 = vadd.f32 %v591, %v1549
        %v1682 = vadd.f32 %v592, %v1551
        %v1683 = vadd.f32 %v593, %v1360
        %v1684 = vadd.f32 %v594, %v1362
        %v1685 = vadd.f32 %v595, %v1553
        %v1686 = vadd.f32 %v596, %v1555
        %v1687 = vadd.f32 %v597, %v1366
        %v1688 = vadd.f32 %v598, %v1368
        %v1689 = vadd.f32 %v599, %v1559
        %v1690 = vadd.f32 %v600, %v1561
        %v1691 = vadd.f32 %v601, %v1370
        %v1692 = vadd.f32 %v602, %v1372
        %v1693 = vadd.f32 %v603, %v1563
        %v1694 = vadd.f32 %v604, %v1565
        %1695 = vst [vmem:[#allocation2] sm:$0xff] %v1567
        %1696 = vst [vmem:[#allocation2 + $0x8] sm:$0xff] %v1568
        %1697 = vst [vmem:[#allocation2 + $0x10] sm:$0xff] %v1569
        %1698 = vst [vmem:[#allocation2 + $0x18] sm:$0xff] %v1570
        %1699 = vst [vmem:[#allocation2 + $0x20] sm:$0xff] %v1571
        %1700 = vst [vmem:[#allocation2 + $0x28] sm:$0xff] %v1572
        %1701 = vst [vmem:[#allocation2 + $0x30] sm:$0xff] %v1573
        %1702 = vst [vmem:[#allocation2 + $0x38] sm:$0xff] %v1574
        %1703 = vst [vmem:[#allocation2 + $0x40] sm:$0xff] %v1575
        %1704 = vst [vmem:[#allocation2 + $0x48] sm:$0xff] %v1576
        %1705 = vst [vmem:[#allocation2 + $0x50] sm:$0xff] %v1577
        %1706 = vst [vmem:[#allocation2 + $0x58] sm:$0xff] %v1578
        %1707 = vst [vmem:[#allocation2 + $0x60] sm:$0xff] %v1579
        %1708 = vst [vmem:[#allocation2 + $0x68] sm:$0xff] %v1580
        %1709 = vst [vmem:[#allocation2 + $0x70] sm:$0xff] %v1581
        %1710 = vst [vmem:[#allocation2 + $0x78] sm:$0xff] %v1582
        %1711 = vst [vmem:[#allocation2 + $0x80] sm:$0xff] %v1583
        %1712 = vst [vmem:[#allocation2 + $0x88] sm:$0xff] %v1584
        %1713 = vst [vmem:[#allocation2 + $0x90] sm:$0xff] %v1585
        %1714 = vst [vmem:[#allocation2 + $0x98] sm:$0xff] %v1586
        %1715 = vst [vmem:[#allocation2 + $0xa0] sm:$0xff] %v1587
        %1716 = vst [vmem:[#allocation2 + $0xa8] sm:$0xff] %v1588
        %1717 = vst [vmem:[#allocation2 + $0xb0] sm:$0xff] %v1589
        %1718 = vst [vmem:[#allocation2 + $0xb8] sm:$0xff] %v1590
        %1719 = vst [vmem:[#allocation2 + $0xc0] sm:$0xff] %v1591
        %1720 = vst [vmem:[#allocation2 + $0xc8] sm:$0xff] %v1592
        %1721 = vst [vmem:[#allocation2 + $0xd0] sm:$0xff] %v1593
        %1722 = vst [vmem:[#allocation2 + $0xd8] sm:$0xff] %v1594
        %1723 = vst [vmem:[#allocation2 + $0xe0] sm:$0xff] %v1595
        %1724 = vst [vmem:[#allocation2 + $0xe8] sm:$0xff] %v1596
        %1725 = vst [vmem:[#allocation2 + $0xf0] sm:$0xff] %v1597
        %1726 = vst [vmem:[#allocation2 + $0xf8] sm:$0xff] %v1598
        %1727 = vst [vmem:[#allocation2 + $0x100] sm:$0xff] %v1599
        %1728 = vst [vmem:[#allocation2 + $0x108] sm:$0xff] %v1600
        %1729 = vst [vmem:[#allocation2 + $0x110] sm:$0xff] %v1601
        %1730 = vst [vmem:[#allocation2 + $0x118] sm:$0xff] %v1602
        %1731 = vst [vmem:[#allocation2 + $0x120] sm:$0xff] %v1603
        %1732 = vst [vmem:[#allocation2 + $0x128] sm:$0xff] %v1604
        %1733 = vst [vmem:[#allocation2 + $0x130] sm:$0xff] %v1605
        %1734 = vst [vmem:[#allocation2 + $0x138] sm:$0xff] %v1606
        %1735 = vst [vmem:[#allocation2 + $0x140] sm:$0xff] %v1607
        %1736 = vst [vmem:[#allocation2 + $0x148] sm:$0xff] %v1608
        %1737 = vst [vmem:[#allocation2 + $0x150] sm:$0xff] %v1609
        %1738 = vst [vmem:[#allocation2 + $0x158] sm:$0xff] %v1610
        %1739 = vst [vmem:[#allocation2 + $0x160] sm:$0xff] %v1611
        %1740 = vst [vmem:[#allocation2 + $0x168] sm:$0xff] %v1612
        %1741 = vst [vmem:[#allocation2 + $0x170] sm:$0xff] %v1613
        %1742 = vst [vmem:[#allocation2 + $0x178] sm:$0xff] %v1614
        %1743 = vst [vmem:[#allocation2 + $0x180] sm:$0xff] %v1615
        %1744 = vst [vmem:[#allocation2 + $0x188] sm:$0xff] %v1616
        %1745 = vst [vmem:[#allocation2 + $0x190] sm:$0xff] %v1617
        %1746 = vst [vmem:[#allocation2 + $0x198] sm:$0xff] %v1618
        %1747 = vst [vmem:[#allocation2 + $0x1a0] sm:$0xff] %v1619
        %1748 = vst [vmem:[#allocation2 + $0x1a8] sm:$0xff] %v1620
        %1749 = vst [vmem:[#allocation2 + $0x1b0] sm:$0xff] %v1621
        %1750 = vst [vmem:[#allocation2 + $0x1b8] sm:$0xff] %v1622
        %1751 = vst [vmem:[#allocation2 + $0x1c0] sm:$0xff] %v1623
        %1752 = vst [vmem:[#allocation2 + $0x1c8] sm:$0xff] %v1624
        %1753 = vst [vmem:[#allocation2 + $0x1d0] sm:$0xff] %v1625
        %1754 = vst [vmem:[#allocation2 + $0x1d8] sm:$0xff] %v1626
        %1755 = vst [vmem:[#allocation2 + $0x1e0] sm:$0xff] %v1627
        %1756 = vst [vmem:[#allocation2 + $0x1e8] sm:$0xff] %v1628
        %1757 = vst [vmem:[#allocation2 + $0x1f0] sm:$0xff] %v1629
        %1758 = vst [vmem:[#allocation2 + $0x1f8] sm:$0xff] %v1630
        %1759 = vst [vmem:[#allocation2 + $0x200] sm:$0xff] %v1631
        %1760 = vst [vmem:[#allocation2 + $0x208] sm:$0xff] %v1632
        %1761 = vst [vmem:[#allocation2 + $0x210] sm:$0xff] %v1633
        %1762 = vst [vmem:[#allocation2 + $0x218] sm:$0xff] %v1634
        %1763 = vst [vmem:[#allocation2 + $0x220] sm:$0xff] %v1635
        %1764 = vst [vmem:[#allocation2 + $0x228] sm:$0xff] %v1636
        %1765 = vst [vmem:[#allocation2 + $0x230] sm:$0xff] %v1637
        %1766 = vst [vmem:[#allocation2 + $0x238] sm:$0xff] %v1638
        %1767 = vst [vmem:[#allocation2 + $0x240] sm:$0xff] %v1639
        %1768 = vst [vmem:[#allocation2 + $0x248] sm:$0xff] %v1640
        %1769 = vst [vmem:[#allocation2 + $0x250] sm:$0xff] %v1641
        %1770 = vst [vmem:[#allocation2 + $0x258] sm:$0xff] %v1642
        %1771 = vst [vmem:[#allocation2 + $0x260] sm:$0xff] %v1643
        %1772 = vst [vmem:[#allocation2 + $0x268] sm:$0xff] %v1644
        %1773 = vst [vmem:[#allocation2 + $0x270] sm:$0xff] %v1645
        %1774 = vst [vmem:[#allocation2 + $0x278] sm:$0xff] %v1646
        %1775 = vst [vmem:[#allocation2 + $0x280] sm:$0xff] %v1647
        %1776 = vst [vmem:[#allocation2 + $0x288] sm:$0xff] %v1648
        %1777 = vst [vmem:[#allocation2 + $0x290] sm:$0xff] %v1649
        %1778 = vst [vmem:[#allocation2 + $0x298] sm:$0xff] %v1650
        %1779 = vst [vmem:[#allocation2 + $0x2a0] sm:$0xff] %v1651
        %1780 = vst [vmem:[#allocation2 + $0x2a8] sm:$0xff] %v1652
        %1781 = vst [vmem:[#allocation2 + $0x2b0] sm:$0xff] %v1653
        %1782 = vst [vmem:[#allocation2 + $0x2b8] sm:$0xff] %v1654
        %1783 = vst [vmem:[#allocation2 + $0x2c0] sm:$0xff] %v1655
        %1784 = vst [vmem:[#allocation2 + $0x2c8] sm:$0xff] %v1656
        %1785 = vst [vmem:[#allocation2 + $0x2d0] sm:$0xff] %v1657
        %1786 = vst [vmem:[#allocation2 + $0x2d8] sm:$0xff] %v1658
        %1787 = vst [vmem:[#allocation2 + $0x2e0] sm:$0xff] %v1659
        %1788 = vst [vmem:[#allocation2 + $0x2e8] sm:$0xff] %v1660
        %1789 = vst [vmem:[#allocation2 + $0x2f0] sm:$0xff] %v1661
        %1790 = vst [vmem:[#allocation2 + $0x2f8] sm:$0xff] %v1662
        %1791 = vst [vmem:[#allocation2 + $0x300] sm:$0xff] %v1663
        %1792 = vst [vmem:[#allocation2 + $0x308] sm:$0xff] %v1664
        %1793 = vst [vmem:[#allocation2 + $0x310] sm:$0xff] %v1665
        %1794 = vst [vmem:[#allocation2 + $0x318] sm:$0xff] %v1666
        %1795 = vst [vmem:[#allocation2 + $0x320] sm:$0xff] %v1667
        %1796 = vst [vmem:[#allocation2 + $0x328] sm:$0xff] %v1668
        %1797 = vst [vmem:[#allocation2 + $0x330] sm:$0xff] %v1669
        %1798 = vst [vmem:[#allocation2 + $0x338] sm:$0xff] %v1670
        %1799 = vst [vmem:[#allocation2 + $0x340] sm:$0xff] %v1671
        %1800 = vst [vmem:[#allocation2 + $0x348] sm:$0xff] %v1672
        %1801 = vst [vmem:[#allocation2 + $0x350] sm:$0xff] %v1673
        %1802 = vst [vmem:[#allocation2 + $0x358] sm:$0xff] %v1674
        %1803 = vst [vmem:[#allocation2 + $0x360] sm:$0xff] %v1675
        %1804 = vst [vmem:[#allocation2 + $0x368] sm:$0xff] %v1676
        %1805 = vst [vmem:[#allocation2 + $0x370] sm:$0xff] %v1677
        %1806 = vst [vmem:[#allocation2 + $0x378] sm:$0xff] %v1678
        %1807 = vst [vmem:[#allocation2 + $0x380] sm:$0xff] %v1679
        %1808 = vst [vmem:[#allocation2 + $0x388] sm:$0xff] %v1680
        %1809 = vst [vmem:[#allocation2 + $0x390] sm:$0xff] %v1681
        %1810 = vst [vmem:[#allocation2 + $0x398] sm:$0xff] %v1682
        %1811 = vst [vmem:[#allocation2 + $0x3a0] sm:$0xff] %v1683
        %1812 = vst [vmem:[#allocation2 + $0x3a8] sm:$0xff] %v1684
        %1813 = vst [vmem:[#allocation2 + $0x3b0] sm:$0xff] %v1685
        %1814 = vst [vmem:[#allocation2 + $0x3b8] sm:$0xff] %v1686
        %1815 = vst [vmem:[#allocation2 + $0x3c0] sm:$0xff] %v1687
        %1816 = vst [vmem:[#allocation2 + $0x3c8] sm:$0xff] %v1688
        %1817 = vst [vmem:[#allocation2 + $0x3d0] sm:$0xff] %v1689
        %1818 = vst [vmem:[#allocation2 + $0x3d8] sm:$0xff] %v1690
        %1819 = vst [vmem:[#allocation2 + $0x3e0] sm:$0xff] %v1691
        %1820 = vst [vmem:[#allocation2 + $0x3e8] sm:$0xff] %v1692
        %1821 = vst [vmem:[#allocation2 + $0x3f0] sm:$0xff] %v1693
        %1822 = vst [vmem:[#allocation2 + $0x3f8] sm:$0xff] %v1694
        // Predicated region
        $region49: #{tpu_custom_call.1} parent=31 // pred_check
          %p1823 = pneg %p323
        $region50: #{tpu_custom_call.1} parent=31 // pred_check_branch
          %1825 = sbr.rel (%p1823) target = $region52
        $region51: #{tpu_custom_call.1} parent=31 // pred_region
          %v1826 = vld [vmem:[#allocation2] sm:$0xff]
          %v1827 = vld [vmem:[#allocation2 + $0x8] sm:$0xff]
          %v1828 = vld [vmem:[#allocation2 + $0x10] sm:$0xff]
          %v1829 = vld [vmem:[#allocation2 + $0x18] sm:$0xff]
          %v1830 = vld [vmem:[#allocation2 + $0x20] sm:$0xff]
          %v1831 = vld [vmem:[#allocation2 + $0x28] sm:$0xff]
          %v1832 = vld [vmem:[#allocation2 + $0x30] sm:$0xff]
          %v1833 = vld [vmem:[#allocation2 + $0x38] sm:$0xff]
          %v1834 = vld [vmem:[#allocation2 + $0x40] sm:$0xff]
          %v1835 = vld [vmem:[#allocation2 + $0x48] sm:$0xff]
          %v1836 = vld [vmem:[#allocation2 + $0x50] sm:$0xff]
          %v1837 = vld [vmem:[#allocation2 + $0x58] sm:$0xff]
          %v1838 = vld [vmem:[#allocation2 + $0x60] sm:$0xff]
          %v1839 = vld [vmem:[#allocation2 + $0x68] sm:$0xff]
          %v1840 = vld [vmem:[#allocation2 + $0x70] sm:$0xff]
          %v1841 = vld [vmem:[#allocation2 + $0x78] sm:$0xff]
          %v1842 = vld [vmem:[#allocation2 + $0x80] sm:$0xff]
          %v1843 = vld [vmem:[#allocation2 + $0x88] sm:$0xff]
          %v1844 = vld [vmem:[#allocation2 + $0x90] sm:$0xff]
          %v1845 = vld [vmem:[#allocation2 + $0x98] sm:$0xff]
          %v1846 = vld [vmem:[#allocation2 + $0xa0] sm:$0xff]
          %v1847 = vld [vmem:[#allocation2 + $0xa8] sm:$0xff]
          %v1848 = vld [vmem:[#allocation2 + $0xb0] sm:$0xff]
          %v1849 = vld [vmem:[#allocation2 + $0xb8] sm:$0xff]
          %v1850 = vld [vmem:[#allocation2 + $0xc0] sm:$0xff]
          %v1851 = vld [vmem:[#allocation2 + $0xc8] sm:$0xff]
          %v1852 = vld [vmem:[#allocation2 + $0xd0] sm:$0xff]
          %v1853 = vld [vmem:[#allocation2 + $0xd8] sm:$0xff]
          %v1854 = vld [vmem:[#allocation2 + $0xe0] sm:$0xff]
          %v1855 = vld [vmem:[#allocation2 + $0xe8] sm:$0xff]
          %v1856 = vld [vmem:[#allocation2 + $0xf0] sm:$0xff]
          %v1857 = vld [vmem:[#allocation2 + $0xf8] sm:$0xff]
          %v1858 = vld [vmem:[#allocation2 + $0x100] sm:$0xff]
          %v1859 = vld [vmem:[#allocation2 + $0x108] sm:$0xff]
          %v1860 = vld [vmem:[#allocation2 + $0x110] sm:$0xff]
          %v1861 = vld [vmem:[#allocation2 + $0x118] sm:$0xff]
          %v1862 = vld [vmem:[#allocation2 + $0x120] sm:$0xff]
          %v1863 = vld [vmem:[#allocation2 + $0x128] sm:$0xff]
          %v1864 = vld [vmem:[#allocation2 + $0x130] sm:$0xff]
          %v1865 = vld [vmem:[#allocation2 + $0x138] sm:$0xff]
          %v1866 = vld [vmem:[#allocation2 + $0x140] sm:$0xff]
          %v1867 = vld [vmem:[#allocation2 + $0x148] sm:$0xff]
          %v1868 = vld [vmem:[#allocation2 + $0x150] sm:$0xff]
          %v1869 = vld [vmem:[#allocation2 + $0x158] sm:$0xff]
          %v1870 = vld [vmem:[#allocation2 + $0x160] sm:$0xff]
          %v1871 = vld [vmem:[#allocation2 + $0x168] sm:$0xff]
          %v1872 = vld [vmem:[#allocation2 + $0x170] sm:$0xff]
          %v1873 = vld [vmem:[#allocation2 + $0x178] sm:$0xff]
          %v1874 = vld [vmem:[#allocation2 + $0x180] sm:$0xff]
          %v1875 = vld [vmem:[#allocation2 + $0x188] sm:$0xff]
          %v1876 = vld [vmem:[#allocation2 + $0x190] sm:$0xff]
          %v1877 = vld [vmem:[#allocation2 + $0x198] sm:$0xff]
          %v1878 = vld [vmem:[#allocation2 + $0x1a0] sm:$0xff]
          %v1879 = vld [vmem:[#allocation2 + $0x1a8] sm:$0xff]
          %v1880 = vld [vmem:[#allocation2 + $0x1b0] sm:$0xff]
          %v1881 = vld [vmem:[#allocation2 + $0x1b8] sm:$0xff]
          %v1882 = vld [vmem:[#allocation2 + $0x1c0] sm:$0xff]
          %v1883 = vld [vmem:[#allocation2 + $0x1c8] sm:$0xff]
          %v1884 = vld [vmem:[#allocation2 + $0x1d0] sm:$0xff]
          %v1885 = vld [vmem:[#allocation2 + $0x1d8] sm:$0xff]
          %v1886 = vld [vmem:[#allocation2 + $0x1e0] sm:$0xff]
          %v1887 = vld [vmem:[#allocation2 + $0x1e8] sm:$0xff]
          %v1888 = vld [vmem:[#allocation2 + $0x1f0] sm:$0xff]
          %v1889 = vld [vmem:[#allocation2 + $0x1f8] sm:$0xff]
          %v1890 = vld [vmem:[#allocation2 + $0x200] sm:$0xff]
          %v1891 = vld [vmem:[#allocation2 + $0x208] sm:$0xff]
          %v1892 = vld [vmem:[#allocation2 + $0x210] sm:$0xff]
          %v1893 = vld [vmem:[#allocation2 + $0x218] sm:$0xff]
          %v1894 = vld [vmem:[#allocation2 + $0x220] sm:$0xff]
          %v1895 = vld [vmem:[#allocation2 + $0x228] sm:$0xff]
          %v1896 = vld [vmem:[#allocation2 + $0x230] sm:$0xff]
          %v1897 = vld [vmem:[#allocation2 + $0x238] sm:$0xff]
          %v1898 = vld [vmem:[#allocation2 + $0x240] sm:$0xff]
          %v1899 = vld [vmem:[#allocation2 + $0x248] sm:$0xff]
          %v1900 = vld [vmem:[#allocation2 + $0x250] sm:$0xff]
          %v1901 = vld [vmem:[#allocation2 + $0x258] sm:$0xff]
          %v1902 = vld [vmem:[#allocation2 + $0x260] sm:$0xff]
          %v1903 = vld [vmem:[#allocation2 + $0x268] sm:$0xff]
          %v1904 = vld [vmem:[#allocation2 + $0x270] sm:$0xff]
          %v1905 = vld [vmem:[#allocation2 + $0x278] sm:$0xff]
          %v1906 = vld [vmem:[#allocation2 + $0x280] sm:$0xff]
          %v1907 = vld [vmem:[#allocation2 + $0x288] sm:$0xff]
          %v1908 = vld [vmem:[#allocation2 + $0x290] sm:$0xff]
          %v1909 = vld [vmem:[#allocation2 + $0x298] sm:$0xff]
          %v1910 = vld [vmem:[#allocation2 + $0x2a0] sm:$0xff]
          %v1911 = vld [vmem:[#allocation2 + $0x2a8] sm:$0xff]
          %v1912 = vld [vmem:[#allocation2 + $0x2b0] sm:$0xff]
          %v1913 = vld [vmem:[#allocation2 + $0x2b8] sm:$0xff]
          %v1914 = vld [vmem:[#allocation2 + $0x2c0] sm:$0xff]
          %v1915 = vld [vmem:[#allocation2 + $0x2c8] sm:$0xff]
          %v1916 = vld [vmem:[#allocation2 + $0x2d0] sm:$0xff]
          %v1917 = vld [vmem:[#allocation2 + $0x2d8] sm:$0xff]
          %v1918 = vld [vmem:[#allocation2 + $0x2e0] sm:$0xff]
          %v1919 = vld [vmem:[#allocation2 + $0x2e8] sm:$0xff]
          %v1920 = vld [vmem:[#allocation2 + $0x2f0] sm:$0xff]
          %v1921 = vld [vmem:[#allocation2 + $0x2f8] sm:$0xff]
          %v1922 = vld [vmem:[#allocation2 + $0x300] sm:$0xff]
          %v1923 = vld [vmem:[#allocation2 + $0x308] sm:$0xff]
          %v1924 = vld [vmem:[#allocation2 + $0x310] sm:$0xff]
          %v1925 = vld [vmem:[#allocation2 + $0x318] sm:$0xff]
          %v1926 = vld [vmem:[#allocation2 + $0x320] sm:$0xff]
          %v1927 = vld [vmem:[#allocation2 + $0x328] sm:$0xff]
          %v1928 = vld [vmem:[#allocation2 + $0x330] sm:$0xff]
          %v1929 = vld [vmem:[#allocation2 + $0x338] sm:$0xff]
          %v1930 = vld [vmem:[#allocation2 + $0x340] sm:$0xff]
          %v1931 = vld [vmem:[#allocation2 + $0x348] sm:$0xff]
          %v1932 = vld [vmem:[#allocation2 + $0x350] sm:$0xff]
          %v1933 = vld [vmem:[#allocation2 + $0x358] sm:$0xff]
          %v1934 = vld [vmem:[#allocation2 + $0x360] sm:$0xff]
          %v1935 = vld [vmem:[#allocation2 + $0x368] sm:$0xff]
          %v1936 = vld [vmem:[#allocation2 + $0x370] sm:$0xff]
          %v1937 = vld [vmem:[#allocation2 + $0x378] sm:$0xff]
          %v1938 = vld [vmem:[#allocation2 + $0x380] sm:$0xff]
          %v1939 = vld [vmem:[#allocation2 + $0x388] sm:$0xff]
          %v1940 = vld [vmem:[#allocation2 + $0x390] sm:$0xff]
          %v1941 = vld [vmem:[#allocation2 + $0x398] sm:$0xff]
          %v1942 = vld [vmem:[#allocation2 + $0x3a0] sm:$0xff]
          %v1943 = vld [vmem:[#allocation2 + $0x3a8] sm:$0xff]
          %v1944 = vld [vmem:[#allocation2 + $0x3b0] sm:$0xff]
          %v1945 = vld [vmem:[#allocation2 + $0x3b8] sm:$0xff]
          %v1946 = vld [vmem:[#allocation2 + $0x3c0] sm:$0xff]
          %v1947 = vld [vmem:[#allocation2 + $0x3c8] sm:$0xff]
          %v1948 = vld [vmem:[#allocation2 + $0x3d0] sm:$0xff]
          %v1949 = vld [vmem:[#allocation2 + $0x3d8] sm:$0xff]
          %v1950 = vld [vmem:[#allocation2 + $0x3e0] sm:$0xff]
          %v1951 = vld [vmem:[#allocation2 + $0x3e8] sm:$0xff]
          %v1952 = vld [vmem:[#allocation2 + $0x3f0] sm:$0xff]
          %v1953 = vld [vmem:[#allocation2 + $0x3f8] sm:$0xff]
          %1954 = vst [vmem:[%s313] sm:$0xff] %v1826
          %1955 = vst [vmem:[%s313 + $0x8] sm:$0xff] %v1827
          %1956 = vst [vmem:[%s313 + $0x10] sm:$0xff] %v1828
          %1957 = vst [vmem:[%s313 + $0x18] sm:$0xff] %v1829
          %1958 = vst [vmem:[%s313 + $0x20] sm:$0xff] %v1830
          %1959 = vst [vmem:[%s313 + $0x28] sm:$0xff] %v1831
          %1960 = vst [vmem:[%s313 + $0x30] sm:$0xff] %v1832
          %1961 = vst [vmem:[%s313 + $0x38] sm:$0xff] %v1833
          %1962 = vst [vmem:[%s313 + $0x40] sm:$0xff] %v1834
          %1963 = vst [vmem:[%s313 + $0x48] sm:$0xff] %v1835
          %1964 = vst [vmem:[%s313 + $0x50] sm:$0xff] %v1836
          %1965 = vst [vmem:[%s313 + $0x58] sm:$0xff] %v1837
          %1966 = vst [vmem:[%s313 + $0x60] sm:$0xff] %v1838
          %1967 = vst [vmem:[%s313 + $0x68] sm:$0xff] %v1839
          %1968 = vst [vmem:[%s313 + $0x70] sm:$0xff] %v1840
          %1969 = vst [vmem:[%s313 + $0x78] sm:$0xff] %v1841
          %1970 = vst [vmem:[%s313 + $0x80] sm:$0xff] %v1842
          %1971 = vst [vmem:[%s313 + $0x88] sm:$0xff] %v1843
          %1972 = vst [vmem:[%s313 + $0x90] sm:$0xff] %v1844
          %1973 = vst [vmem:[%s313 + $0x98] sm:$0xff] %v1845
          %1974 = vst [vmem:[%s313 + $0xa0] sm:$0xff] %v1846
          %1975 = vst [vmem:[%s313 + $0xa8] sm:$0xff] %v1847
          %1976 = vst [vmem:[%s313 + $0xb0] sm:$0xff] %v1848
          %1977 = vst [vmem:[%s313 + $0xb8] sm:$0xff] %v1849
          %1978 = vst [vmem:[%s313 + $0xc0] sm:$0xff] %v1850
          %1979 = vst [vmem:[%s313 + $0xc8] sm:$0xff] %v1851
          %1980 = vst [vmem:[%s313 + $0xd0] sm:$0xff] %v1852
          %1981 = vst [vmem:[%s313 + $0xd8] sm:$0xff] %v1853
          %1982 = vst [vmem:[%s313 + $0xe0] sm:$0xff] %v1854
          %1983 = vst [vmem:[%s313 + $0xe8] sm:$0xff] %v1855
          %1984 = vst [vmem:[%s313 + $0xf0] sm:$0xff] %v1856
          %1985 = vst [vmem:[%s313 + $0xf8] sm:$0xff] %v1857
          %1986 = vst [vmem:[%s313 + $0x100] sm:$0xff] %v1858
          %1987 = vst [vmem:[%s313 + $0x108] sm:$0xff] %v1859
          %1988 = vst [vmem:[%s313 + $0x110] sm:$0xff] %v1860
          %1989 = vst [vmem:[%s313 + $0x118] sm:$0xff] %v1861
          %1990 = vst [vmem:[%s313 + $0x120] sm:$0xff] %v1862
          %1991 = vst [vmem:[%s313 + $0x128] sm:$0xff] %v1863
          %1992 = vst [vmem:[%s313 + $0x130] sm:$0xff] %v1864
          %1993 = vst [vmem:[%s313 + $0x138] sm:$0xff] %v1865
          %1994 = vst [vmem:[%s313 + $0x140] sm:$0xff] %v1866
          %1995 = vst [vmem:[%s313 + $0x148] sm:$0xff] %v1867
          %1996 = vst [vmem:[%s313 + $0x150] sm:$0xff] %v1868
          %1997 = vst [vmem:[%s313 + $0x158] sm:$0xff] %v1869
          %1998 = vst [vmem:[%s313 + $0x160] sm:$0xff] %v1870
          %1999 = vst [vmem:[%s313 + $0x168] sm:$0xff] %v1871
          %2000 = vst [vmem:[%s313 + $0x170] sm:$0xff] %v1872
          %2001 = vst [vmem:[%s313 + $0x178] sm:$0xff] %v1873
          %2002 = vst [vmem:[%s313 + $0x180] sm:$0xff] %v1874
          %2003 = vst [vmem:[%s313 + $0x188] sm:$0xff] %v1875
          %2004 = vst [vmem:[%s313 + $0x190] sm:$0xff] %v1876
          %2005 = vst [vmem:[%s313 + $0x198] sm:$0xff] %v1877
          %2006 = vst [vmem:[%s313 + $0x1a0] sm:$0xff] %v1878
          %2007 = vst [vmem:[%s313 + $0x1a8] sm:$0xff] %v1879
          %2008 = vst [vmem:[%s313 + $0x1b0] sm:$0xff] %v1880
          %2009 = vst [vmem:[%s313 + $0x1b8] sm:$0xff] %v1881
          %2010 = vst [vmem:[%s313 + $0x1c0] sm:$0xff] %v1882
          %2011 = vst [vmem:[%s313 + $0x1c8] sm:$0xff] %v1883
          %2012 = vst [vmem:[%s313 + $0x1d0] sm:$0xff] %v1884
          %2013 = vst [vmem:[%s313 + $0x1d8] sm:$0xff] %v1885
          %2014 = vst [vmem:[%s313 + $0x1e0] sm:$0xff] %v1886
          %2015 = vst [vmem:[%s313 + $0x1e8] sm:$0xff] %v1887
          %2016 = vst [vmem:[%s313 + $0x1f0] sm:$0xff] %v1888
          %2017 = vst [vmem:[%s313 + $0x1f8] sm:$0xff] %v1889
          %2018 = vst [vmem:[%s313 + $0x200] sm:$0xff] %v1890
          %2019 = vst [vmem:[%s313 + $0x208] sm:$0xff] %v1891
          %2020 = vst [vmem:[%s313 + $0x210] sm:$0xff] %v1892
          %2021 = vst [vmem:[%s313 + $0x218] sm:$0xff] %v1893
          %2022 = vst [vmem:[%s313 + $0x220] sm:$0xff] %v1894
          %2023 = vst [vmem:[%s313 + $0x228] sm:$0xff] %v1895
          %2024 = vst [vmem:[%s313 + $0x230] sm:$0xff] %v1896
          %2025 = vst [vmem:[%s313 + $0x238] sm:$0xff] %v1897
          %2026 = vst [vmem:[%s313 + $0x240] sm:$0xff] %v1898
          %2027 = vst [vmem:[%s313 + $0x248] sm:$0xff] %v1899
          %2028 = vst [vmem:[%s313 + $0x250] sm:$0xff] %v1900
          %2029 = vst [vmem:[%s313 + $0x258] sm:$0xff] %v1901
          %2030 = vst [vmem:[%s313 + $0x260] sm:$0xff] %v1902
          %2031 = vst [vmem:[%s313 + $0x268] sm:$0xff] %v1903
          %2032 = vst [vmem:[%s313 + $0x270] sm:$0xff] %v1904
          %2033 = vst [vmem:[%s313 + $0x278] sm:$0xff] %v1905
          %2034 = vst [vmem:[%s313 + $0x280] sm:$0xff] %v1906
          %2035 = vst [vmem:[%s313 + $0x288] sm:$0xff] %v1907
          %2036 = vst [vmem:[%s313 + $0x290] sm:$0xff] %v1908
          %2037 = vst [vmem:[%s313 + $0x298] sm:$0xff] %v1909
          %2038 = vst [vmem:[%s313 + $0x2a0] sm:$0xff] %v1910
          %2039 = vst [vmem:[%s313 + $0x2a8] sm:$0xff] %v1911
          %2040 = vst [vmem:[%s313 + $0x2b0] sm:$0xff] %v1912
          %2041 = vst [vmem:[%s313 + $0x2b8] sm:$0xff] %v1913
          %2042 = vst [vmem:[%s313 + $0x2c0] sm:$0xff] %v1914
          %2043 = vst [vmem:[%s313 + $0x2c8] sm:$0xff] %v1915
          %2044 = vst [vmem:[%s313 + $0x2d0] sm:$0xff] %v1916
          %2045 = vst [vmem:[%s313 + $0x2d8] sm:$0xff] %v1917
          %2046 = vst [vmem:[%s313 + $0x2e0] sm:$0xff] %v1918
          %2047 = vst [vmem:[%s313 + $0x2e8] sm:$0xff] %v1919
          %2048 = vst [vmem:[%s313 + $0x2f0] sm:$0xff] %v1920
          %2049 = vst [vmem:[%s313 + $0x2f8] sm:$0xff] %v1921
          %2050 = vst [vmem:[%s313 + $0x300] sm:$0xff] %v1922
          %2051 = vst [vmem:[%s313 + $0x308] sm:$0xff] %v1923
          %2052 = vst [vmem:[%s313 + $0x310] sm:$0xff] %v1924
          %2053 = vst [vmem:[%s313 + $0x318] sm:$0xff] %v1925
          %2054 = vst [vmem:[%s313 + $0x320] sm:$0xff] %v1926
          %2055 = vst [vmem:[%s313 + $0x328] sm:$0xff] %v1927
          %2056 = vst [vmem:[%s313 + $0x330] sm:$0xff] %v1928
          %2057 = vst [vmem:[%s313 + $0x338] sm:$0xff] %v1929
          %2058 = vst [vmem:[%s313 + $0x340] sm:$0xff] %v1930
          %2059 = vst [vmem:[%s313 + $0x348] sm:$0xff] %v1931
          %2060 = vst [vmem:[%s313 + $0x350] sm:$0xff] %v1932
          %2061 = vst [vmem:[%s313 + $0x358] sm:$0xff] %v1933
          %2062 = vst [vmem:[%s313 + $0x360] sm:$0xff] %v1934
          %2063 = vst [vmem:[%s313 + $0x368] sm:$0xff] %v1935
          %2064 = vst [vmem:[%s313 + $0x370] sm:$0xff] %v1936
          %2065 = vst [vmem:[%s313 + $0x378] sm:$0xff] %v1937
          %2066 = vst [vmem:[%s313 + $0x380] sm:$0xff] %v1938
          %2067 = vst [vmem:[%s313 + $0x388] sm:$0xff] %v1939
          %2068 = vst [vmem:[%s313 + $0x390] sm:$0xff] %v1940
          %2069 = vst [vmem:[%s313 + $0x398] sm:$0xff] %v1941
          %2070 = vst [vmem:[%s313 + $0x3a0] sm:$0xff] %v1942
          %2071 = vst [vmem:[%s313 + $0x3a8] sm:$0xff] %v1943
          %2072 = vst [vmem:[%s313 + $0x3b0] sm:$0xff] %v1944
          %2073 = vst [vmem:[%s313 + $0x3b8] sm:$0xff] %v1945
          %2074 = vst [vmem:[%s313 + $0x3c0] sm:$0xff] %v1946
          %2075 = vst [vmem:[%s313 + $0x3c8] sm:$0xff] %v1947
          %2076 = vst [vmem:[%s313 + $0x3d0] sm:$0xff] %v1948
          %2077 = vst [vmem:[%s313 + $0x3d8] sm:$0xff] %v1949
          %2078 = vst [vmem:[%s313 + $0x3e0] sm:$0xff] %v1950
          %2079 = vst [vmem:[%s313 + $0x3e8] sm:$0xff] %v1951
          %2080 = vst [vmem:[%s313 + $0x3f0] sm:$0xff] %v1952
          %2081 = vst [vmem:[%s313 + $0x3f8] sm:$0xff] %v1953
        $region52: #{tpu_custom_call.1} parent=31 // pred_fallthru
          _
        %s2082 = sand.u32 %s147, 1
        %s2083 = scalar_lea.sflag [#allocation7], %s2082
        %s2084 = sand.u32 %s147, 1
        %s2085 = smul.addr %s2084, 1024
        %s2086 = scalar_lea.vmem [#allocation11], %s2085
        // Predicated region
        $region53: #{tpu_custom_call.1} parent=31 // pred_check
          %p2087 = pneg %p157
        $region54: #{tpu_custom_call.1} parent=31 // pred_check_branch
          %2089 = sbr.rel (%p2087) target = $region56
        $region55: #{tpu_custom_call.1} parent=31 // pred_region
          %s2090 = smul.u32 32, %s33
          %s2091 = smul.u32 4, %s34
          %s2093 = ssub.s32 16384, 16384
          %2094 = vsyncadd %s2083, %s2093
          %s2095 = smul.addr %s2090, 4
          %s2096 = sadd.s32 %s2091, %s2095
          %s2097 = smul.addr %s2096, 128
          %s2098 = scalar_lea.hbm %s4, %s2097
          %s2099 = sshll.u32 %s2086, 4
          %s2100 = int_to_ptr.vmem [resolvable:$true] %s2099
          %2105 = dma.vmem_to_hbm [thread:$0]  %s2100, 16384, %s2098, %s2083, 512, 512, 32
        $region56: #{tpu_custom_call.1} parent=31 // pred_fallthru
          _
      $region32: #{tpu_custom_call.1} parent=5 // pred_fallthru
        _
      %p2106 = scmp.le.s32.totalorder 2, %s23
      // Predicated region
      $region57: #{tpu_custom_call.1} parent=5 // pred_check
        %p2107 = pneg %p2106
      $region58: #{tpu_custom_call.1} parent=5 // pred_check_branch
        %2109 = sbr.rel (%p2107) target = $region60
      $region59: #{tpu_custom_call.1} parent=5 // pred_region
        %s2110 = ssub.s32 %s23, 2
        // Predicated region
        $region61: #{tpu_custom_call.1} parent=59 // pred_check
          %p2111 = pneg %p163
        $region62: #{tpu_custom_call.1} parent=59 // pred_check_branch
          %2113 = sbr.rel (%p2111) target = $region64
        $region63: #{tpu_custom_call.1} parent=59 // pred_region
          %s2114 = sand.u32 %s148, 1
          %s2115 = scalar_lea.sflag [#allocation7], %s2114
          %s2116 = sand.u32 %s148, 1
          %s2117 = smul.addr %s2116, 1024
          %s2118 = scalar_lea.vmem [#allocation11], %s2117
          %2119 = dma.done %s2115, 16384
        $region64: #{tpu_custom_call.1} parent=59 // pred_fallthru
          _
      $region60: #{tpu_custom_call.1} parent=5 // pred_fallthru
        _
    $region6: #{tpu_custom_call.1} parent=1 // loop_footer
      %s27 = sadd.s32 1, %s23
    $region7: #{tpu_custom_call.1} parent=1 // loop_footer_branch
      %22 = sbr.rel target = $region3
    $region8: #{tpu_custom_call.1} parent=1 // loop_exit
      _
    %2120 = vsyncpa [#allocation6], 1
    %s2121 = scalar_lea.sflag [#allocation6], 1
    %2122 = vsyncpa %s2121, 1
    %2123 = vsyncpa [#allocation9], 1
    %s2124 = scalar_lea.sflag [#allocation9], 1
    %2125 = vsyncpa %s2124, 1
    %2126 = vsyncpa [#allocation7], 1
    %s2127 = scalar_lea.sflag [#allocation7], 1
    %2128 = vsyncpa %s2127, 1

</llo_original>
